<compile_context>
chip_gen: v7x
topology: tpu7x:2x2x1
jax: 0.10.0
libtpu: 0.0.40
codegen_flags: <defaults>
</compile_context>

<pallas_src>
from functools import partial

import jax
import jax.numpy as jnp
from jax import lax
from jax.experimental import pallas as pl
from jax.experimental.pallas import tpu as pltpu


def _attention_kernel(x_ref, wq_ref, bq_ref, wkv_ref, bkv_ref, wo_ref, bo_ref,
                      o_ref, qout_ref, q_scr, qc_scr, attn_scr, *,
                      num_heads, key_filters, value_filters, tile_kv,
                      mxu_dtype, approx_recip):
    kv = pl.program_id(1)
    n_kv = pl.num_programs(1)

    Fk = key_filters
    Fv = value_filters
    d_k = Fk // num_heads
    d_v = Fv // num_heads
    scale = d_k ** -0.5
    L = x_ref.shape[1]

    # ---- per-batch init: full-L scaled query projection + zeroed PV accumulator ----
    @pl.when(kv == 0)
    def _init():
        x = x_ref[...]                                                # [C, L] (mxu dtype)
        q = lax.dot_general(wq_ref[...], x, (((1,), (0,)), ((), ())),
                            preferred_element_type=jnp.float32)      # [Fk, L]
        q = (q + bq_ref[...]) * scale                                 # scaled q (PyTorch semantics)
        q_scr[...] = q                                                # f32 copy for the q output
        # one-time cast to the MXU dtype, stored per-head so per-step/per-head slices
        # are free leading-dim views even when d_k is not a multiple of 8
        qc_scr[...] = q.reshape(num_heads, d_k, L).astype(mxu_dtype)
        attn_scr[...] = jnp.zeros_like(attn_scr)

    # ---- stream out the scaled-q column slice of this KV tile (lane-dense stores) ----
    start = pl.multiple_of(kv * tile_kv, tile_kv)
    qout_ref[...] = q_scr[:, pl.ds(start, tile_kv)]

    # ---- fused K/V projection on the current KV tile ----
    x_tile = x_ref[:, pl.ds(start, tile_kv)]                          # [C, T]
    kvp = lax.dot_general(wkv_ref[...], x_tile, (((1,), (0,)), ((), ())),
                          preferred_element_type=jnp.float32) + bkv_ref[...]
    k = kvp[:Fk, :]                                                   # [Fk, T]
    v = kvp[Fk:, :]                                                   # [Fv, T]

    # ---- per-head attention; accumulate PV partial sums ----
    # TODO(synk): for large num_heads switch to a head-batched dot_general / fori_loop
    # to avoid replicating [L, T] temporaries in the unrolled IR.
    for h in range(num_heads):                                        # num_heads is static
        qh = qc_scr[h]                                                # [d_k, L], mxu dtype
        kh = k[h * d_k:(h + 1) * d_k, :].astype(mxu_dtype)            # [d_k, T]

        # logits[Lq, T] = qh^T @ kh  (contract d_k, no materialized transpose)
        logits = lax.dot_general(qh, kh, (((0,), (0,)), ((), ())),
                                 preferred_element_type=jnp.float32)

        # softmax over the QUERY axis (dim=2 of [B,H,Lq,Lkv] == axis 0 here); the full
        # Lq axis is present, so the KV tiling is exact.  Fold the reciprocal into V:
        #   o = (v * 1/colsum(e)) @ e^T
        # so no [Lq, T] weight matrix (or its bf16 cast) is ever materialized.
        m = jnp.max(logits, axis=0, keepdims=True)
        e = jnp.exp(logits - m)                                       # [Lq, T]
        r = pl.reciprocal(jnp.sum(e, axis=0, keepdims=True), approx=approx_recip)
        vs = (v[h * d_v:(h + 1) * d_v, :] * r).astype(mxu_dtype)      # [d_v, T]

        # o_h[d_v, Lq] = vs @ e^T  (contract the KV-tile axis of both, no transpose)
        oh = lax.dot_general(vs, e.astype(mxu_dtype), (((1,), (1,)), ((), ())),
                             preferred_element_type=jnp.float32)
        attn_scr[h] = attn_scr[h] + oh

    # ---- finalize: ONE Fv-deep output-transform matmul ----
    @pl.when(kv == n_kv - 1)
    def _finalize():
        acc = attn_scr[...].reshape(Fv, L)                            # combine_heads, once
        o = lax.dot_general(wo_ref[...], acc.astype(mxu_dtype),
                            (((1,), (0,)), ((), ())),
                            preferred_element_type=jnp.float32)
        o_ref[...] = o + bo_ref[...]


def attention_gvtn(x, params, num_heads, *, tile_kv=None,
                   mxu_dtype=jnp.float32, approx_recip=None):
    B, C, Hsp, Wsp = x.shape
    L = Hsp * Wsp
    Fk = params["wq"].shape[0]
    Fv = params["wv"].shape[0]
    Fo = params["wo"].shape[0]
    d_k = Fk // num_heads
    d_v = Fv // num_heads

    if approx_recip is None:
        approx_recip = (mxu_dtype != jnp.float32)
    mxu_bytes = jnp.dtype(mxu_dtype).itemsize
    f32b = 4

    # bf16 fast path: pre-cast MXU operands in the wrapper (halves x DMA / VMEM bytes
    # and removes per-step casts).  Biases + accumulation stay f32.
    x_flat = x.reshape(B, C, L).astype(mxu_dtype)
    wq = params["wq"].astype(mxu_dtype)
    wkv = jnp.concatenate([params["wk"], params["wv"]], axis=0).astype(mxu_dtype)
    wo = params["wo"].astype(mxu_dtype)
    bq = params["bq"].astype(jnp.float32)
    bkv = jnp.concatenate([params["bk"], params["bv"]], axis=0).astype(jnp.float32)
    bo = params["bo"].astype(jnp.float32)

    # ---- generation-aware VMEM budget (v5e/v6e: 128 MiB, v7x: 64 MiB) ----
    try:
        vmem_cap = int(pltpu.get_tpu_info().vmem_capacity_bytes)
    except Exception:
        vmem_cap = 64 * 1024 * 1024        # conservative (v7x) fallback
    budget = int(vmem_cap * 0.8)

    # padded sublane sizes for the per-head scratches (sub-8 head dims get padded)
    pdk = max(d_k, 8)
    pdv = max(d_v, 8)

    # tile-independent resident bytes
    resident = (2 * C * L * mxu_bytes                       # x (double-buffered input)
                + 2 * Fo * L * f32b                         # o output (resident)
                + Fk * L * f32b                             # q f32 scratch
                + num_heads * pdk * L * mxu_bytes           # q mxu-dtype scratch
                + num_heads * pdv * L * f32b                # PV accumulator
                + 2 * ((2 * Fk + Fv) * C + Fo * Fv) * mxu_bytes   # weights
                + 2 * (2 * Fk + Fv + Fo) * f32b)            # biases

    def temps(T):
        return (L * T * (2 * f32b + mxu_bytes)              # logits + e (+ e cast)
                + (Fk + Fv) * T * (f32b + mxu_bytes)        # kv projection + casts
                + pdv * L * f32b                            # per-head PV partial
                + 2 * Fk * T * f32b)                        # q output tile (double-buf)

    # ---- KV tile selection: largest lane-aligned tile that divides L and fits ----
    if tile_kv is None:
        if resident + temps(L) <= budget:
            tile_kv = L
        else:
            tile_kv = 128 if L % 128 == 0 else L
            for cand in (2048, 1024, 512, 256, 128):
                if cand < L and L % cand == 0 and resident + temps(cand) <= budget:
                    tile_kv = cand
                    break
    if L % tile_kv != 0:
        raise ValueError(f"tile_kv={tile_kv} must divide L={L}")
    if tile_kv != L and tile_kv % 128 != 0:
        raise ValueError(f"tile_kv={tile_kv} must be a multiple of 128 (or == L)")
    n_kv = L // tile_kv
    # TODO(synk): when L is not a multiple of 128 we fall back to a single full-L KV
    # tile (correct but stores are masked); lane-padding L would need key masking.

    vmem_limit = int(min(max(vmem_cap - 2 * 1024 * 1024, 32 * 1024 * 1024),
                         max(int(1.5 * (resident + temps(tile_kv))),
                             32 * 1024 * 1024)))

    kernel = partial(_attention_kernel, num_heads=num_heads, key_filters=Fk,
                     value_filters=Fv, tile_kv=tile_kv, mxu_dtype=mxu_dtype,
                     approx_recip=approx_recip)

    o, q = pl.pallas_call(
        kernel,
        out_shape=(jax.ShapeDtypeStruct((B, Fo, L), jnp.float32),
                   jax.ShapeDtypeStruct((B, Fk, L), jnp.float32)),
        grid_spec=pltpu.PrefetchScalarGridSpec(
            num_scalar_prefetch=0,
            grid=(B, n_kv),
            in_specs=[
                # x: batch-resident slab, constant over the kv axis (sliced in-kernel)
                pl.BlockSpec((None, C, L), lambda b, k: (b, 0, 0)),
                pl.BlockSpec((Fk, C), lambda b, k: (0, 0)),            # wq
                pl.BlockSpec((Fk, 1), lambda b, k: (0, 0)),            # bq
                pl.BlockSpec((Fk + Fv, C), lambda b, k: (0, 0)),       # wkv (fused)
                pl.BlockSpec((Fk + Fv, 1), lambda b, k: (0, 0)),       # bkv (fused)
                pl.BlockSpec((Fo, Fv), lambda b, k: (0, 0)),           # wo (single matmul)
                pl.BlockSpec((Fo, 1), lambda b, k: (0, 0)),            # bo
            ],
            out_specs=[
                # o: constant over kv -> resident; written only at the last kv step
                pl.BlockSpec((None, Fo, L), lambda b, k: (b, 0, 0)),
                # scaled q: streamed out one KV-tile column slice per step
                pl.BlockSpec((None, Fk, tile_kv), lambda b, k: (b, 0, k)),
            ],
            scratch_shapes=[
                pltpu.VMEM((Fk, L), jnp.float32),                  # scaled q (f32)
                pltpu.VMEM((num_heads, d_k, L), mxu_dtype),        # scaled q (MXU dtype)
                pltpu.VMEM((num_heads, d_v, L), jnp.float32),      # PV accumulator
            ]),
        compiler_params=pltpu.CompilerParams(
            dimension_semantics=("parallel", "arbitrary"),
            vmem_limit_bytes=vmem_limit),
    )(x_flat, wq, bq, wkv, bkv, wo, bo)

    return o.reshape(B, Fo, Hsp, Wsp), q.reshape(B, Fk, Hsp, Wsp)


def reference(x, p, num_heads):
    """Plain-JAX re-implementation of the PyTorch forward for validation."""
    B, C, H, W = x.shape
    L = H * W
    xf = x.reshape(B, C, L)
    q = jnp.einsum("oc,bcl->bol", p["wq"], xf) + p["bq"][None]
    k = jnp.einsum("oc,bcl->bol", p["wk"], xf) + p["bk"][None]
    v = jnp.einsum("oc,bcl->bol", p["wv"], xf) + p["bv"][None]
    Fk, Fv, Fo = p["wq"].shape[0], p["wv"].shape[0], p["wo"].shape[0]
    d_k, d_v = Fk // num_heads, Fv // num_heads
    q = q * (d_k ** -0.5)
    qh = q.reshape(B, num_heads, d_k, L)
    kh = k.reshape(B, num_heads, d_k, L)
    vh = v.reshape(B, num_heads, d_v, L)
    logits = jnp.einsum("bhdq,bhdk->bhqk", qh, kh)
    w = jax.nn.softmax(logits, axis=2)           # softmax over Lq (dim=2), as in PyTorch
    o = jnp.einsum("bhck,bhqk->bhcq", vh, w)     # v @ w^T
    o = o.reshape(B, Fv, L)
    out = jnp.einsum("of,bfl->bol", p["wo"], o) + p["bo"][None]
    return out.reshape(B, Fo, H, W), q.reshape(B, Fk, H, W)


if __name__ == "__main__":
    # Small shapes consistent with the module (layer_type='SAME'); L = 256 is lane-dense.
    B, C, H, W = 2, 4, 16, 16
    total_key_filters = 8
    total_value_filters = 8
    output_filters = 8          # must equal total_value_filters for output_transform
    num_heads = 2

    key = jax.random.PRNGKey(0)
    ks = jax.random.split(key, 9)
    x = jax.random.normal(ks[0], (B, C, H, W), dtype=jnp.float32)

    params = {
        "wq": jax.random.normal(ks[1], (total_key_filters, C), jnp.float32) * 0.1,
        "bq": jax.random.normal(ks[2], (total_key_filters, 1), jnp.float32) * 0.1,
        "wk": jax.random.normal(ks[3], (total_key_filters, C), jnp.float32) * 0.1,
        "bk": jax.random.normal(ks[4], (total_key_filters, 1), jnp.float32) * 0.1,
        "wv": jax.random.normal(ks[5], (total_value_filters, C), jnp.float32) * 0.1,
        "bv": jax.random.normal(ks[6], (total_value_filters, 1), jnp.float32) * 0.1,
        "wo": jax.random.normal(ks[7], (output_filters, total_value_filters), jnp.float32) * 0.1,
        "bo": jax.random.normal(ks[8], (output_filters, 1), jnp.float32) * 0.1,
    }

    o_gold, q_gold = reference(x, params, num_heads)

    # 1) strict f32 path (auto KV tile -> single tile at this L)
    o, q = attention_gvtn(x, params, num_heads)
    jax.block_until_ready((o, q))
    assert jnp.allclose(o, o_gold, atol=1e-4, rtol=1e-4), "output mismatch (f32)"
    assert jnp.allclose(q, q_gold, atol=1e-4, rtol=1e-4), "q mismatch (f32)"

    # 2) exercise the multi-step KV-tiled accumulation + streamed-q path
    o2, q2 = attention_gvtn(x, params, num_heads, tile_kv=128)
    jax.block_until_ready((o2, q2))
    assert jnp.allclose(o2, o_gold, atol=1e-4, rtol=1e-4), "output mismatch (tiled)"
    assert jnp.allclose(q2, q_gold, atol=1e-4, rtol=1e-4), "q mismatch (tiled)"

    # 3) bf16-MXU / f32-accumulate fast path (v6e/v7x), loose tolerance
    o3, q3 = attention_gvtn(x, params, num_heads, tile_kv=128, mxu_dtype=jnp.bfloat16)
    jax.block_until_ready((o3, q3))
    assert jnp.allclose(o3, o_gold, atol=5e-2, rtol=5e-2), "output mismatch (bf16)"
    assert jnp.allclose(q3, q_gold, atol=5e-2, rtol=5e-2), "q mismatch (bf16)"

    # TODO(synk): layer_type='DOWN'/'UP' (strided / transposed 3x3 conv for q),
    # dropout_rate>0 and use_softmax=False are not implemented; only the 'SAME'
    # softmax path with dropout 0 is covered here.
    print("KERNEL_OK")
</pallas_src>

<mosaic_0001>
module attributes {stable_mosaic.version = 11 : i64} {
  func.func @_attention_kernel(%arg0: i32, %arg1: i32, %arg2: memref<1x4x256xf32, #tpu.memory_space<vmem>>, %arg3: memref<8x4xf32, #tpu.memory_space<vmem>>, %arg4: memref<8x1xf32, #tpu.memory_space<vmem>>, %arg5: memref<16x4xf32, #tpu.memory_space<vmem>>, %arg6: memref<16x1xf32, #tpu.memory_space<vmem>>, %arg7: memref<8x8xf32, #tpu.memory_space<vmem>>, %arg8: memref<8x1xf32, #tpu.memory_space<vmem>>, %arg9: memref<1x8x256xf32, #tpu.memory_space<vmem>>, %arg10: memref<1x8x256xf32, #tpu.memory_space<vmem>>, %arg11: memref<8x256xf32, #tpu.memory_space<vmem>>, %arg12: memref<2x4x256xf32, #tpu.memory_space<vmem>>, %arg13: memref<2x4x256xf32, #tpu.memory_space<vmem>>) attributes {dimension_semantics = [#tpu.dimension_semantics<parallel>, #tpu.dimension_semantics<arbitrary>], iteration_bounds = array<i64: 2, 1>, scalar_prefetch = 0 : i64, scratch_operands = 3 : i64, tpu.core_type = #tpu.core_type<tc>, window_params = [{transform_indices = @transform_0, window_bounds = array<i64: 1, 4, 256>}, {pipeline_mode = #tpu.pipeline_mode<synchronous>, transform_indices = @transform_1, window_bounds = array<i64: 8, 4>}, {pipeline_mode = #tpu.pipeline_mode<synchronous>, transform_indices = @transform_2, window_bounds = array<i64: 8, 1>}, {pipeline_mode = #tpu.pipeline_mode<synchronous>, transform_indices = @transform_3, window_bounds = array<i64: 16, 4>}, {pipeline_mode = #tpu.pipeline_mode<synchronous>, transform_indices = @transform_4, window_bounds = array<i64: 16, 1>}, {pipeline_mode = #tpu.pipeline_mode<synchronous>, transform_indices = @transform_5, window_bounds = array<i64: 8, 8>}, {pipeline_mode = #tpu.pipeline_mode<synchronous>, transform_indices = @transform_6, window_bounds = array<i64: 8, 1>}, {transform_indices = @transform_7, window_bounds = array<i64: 1, 8, 256>}, {transform_indices = @transform_8, window_bounds = array<i64: 1, 8, 256>}]} {
    %c0_i32 = arith.constant 0 : i32
    %0 = arith.cmpi eq, %arg1, %c0_i32 : i32
    %1 = arith.extui %0 : i1 to i32
    %c0_i32_0 = arith.constant 0 : i32
    %2 = arith.cmpi ne, %1, %c0_i32_0 : i32
    scf.if %2 {
      %c0_37 = arith.constant 0 : index
      %c0_38 = arith.constant 0 : index
      %c0_39 = arith.constant 0 : index
      %67 = vector.load %arg2[%c0_37, %c0_38, %c0_39] : memref<1x4x256xf32, #tpu.memory_space<vmem>>, vector<1x4x256xf32>
      %68 = vector.shape_cast %67 : vector<1x4x256xf32> to vector<4x256xf32>
      %c0_40 = arith.constant 0 : index
      %c0_41 = arith.constant 0 : index
      %69 = vector.load %arg3[%c0_40, %c0_41] : memref<8x4xf32, #tpu.memory_space<vmem>>, vector<8x4xf32>
      %cst_42 = arith.constant dense<0.000000e+00> : vector<8x256xf32>
      %70 = tpu.matmul %69, %68, %cst_42 {dimension_numbers = #tpu.dot_dimension_numbers<[1], [0], [0], [1], [0, 0, 1, 1], [], []>} : vector<8x4xf32>, vector<4x256xf32>, vector<8x256xf32> -> vector<8x256xf32>
      %c0_43 = arith.constant 0 : index
      %c0_44 = arith.constant 0 : index
      %71 = vector.load %arg4[%c0_43, %c0_44] : memref<8x1xf32, #tpu.memory_space<vmem>>, vector<8x1xf32>
      %72 = vector.broadcast %71 : vector<8x1xf32> to vector<8x256xf32>
      %73 = arith.addf %70, %72 : vector<8x256xf32>
      %cst_45 = arith.constant 5.000000e-01 : f32
      %74 = vector.broadcast %cst_45 : f32 to vector<8x256xf32>
      %75 = arith.mulf %73, %74 : vector<8x256xf32>
      %c0_46 = arith.constant 0 : index
      %c0_47 = arith.constant 0 : index
      %76 = vector.load %arg11[%c0_46, %c0_47] : memref<8x256xf32, #tpu.memory_space<vmem>>, vector<8x256xf32>
      tpu.vector_store %arg11[%c0_46, %c0_47], %75 {strides = array<i32>} : memref<8x256xf32, #tpu.memory_space<vmem>>, vector<8x256xf32>,
      %77 = vector.shape_cast %75 : vector<8x256xf32> to vector<2x4x256xf32>
      %c0_48 = arith.constant 0 : index
      %c0_49 = arith.constant 0 : index
      %c0_50 = arith.constant 0 : index
      %78 = vector.load %arg12[%c0_48, %c0_49, %c0_50] : memref<2x4x256xf32, #tpu.memory_space<vmem>>, vector<2x4x256xf32>
      tpu.vector_store %arg12[%c0_48, %c0_49, %c0_50], %77 {strides = array<i32>} : memref<2x4x256xf32, #tpu.memory_space<vmem>>, vector<2x4x256xf32>,
      %cst_51 = arith.constant 0.000000e+00 : f32
      %79 = vector.broadcast %cst_51 : f32 to vector<2x4x256xf32>
      %c0_52 = arith.constant 0 : index
      %c0_53 = arith.constant 0 : index
      %c0_54 = arith.constant 0 : index
      %80 = vector.load %arg13[%c0_52, %c0_53, %c0_54] : memref<2x4x256xf32, #tpu.memory_space<vmem>>, vector<2x4x256xf32>
      tpu.vector_store %arg13[%c0_52, %c0_53, %c0_54], %79 {strides = array<i32>} : memref<2x4x256xf32, #tpu.memory_space<vmem>>, vector<2x4x256xf32>,
    } else {
    }
    %c256_i32 = arith.constant 256 : i32
    %3 = arith.muli %arg1, %c256_i32 : i32
    %4 = tpu.assume_multiple %3, 256 : i32
    %c0 = arith.constant 0 : index
    %5 = arith.index_cast %4 : i32 to index
    %6 = vector.load %arg11[%c0, %5] : memref<8x256xf32, #tpu.memory_space<vmem>>, vector<8x256xf32>
    %c0_1 = arith.constant 0 : index
    %c0_2 = arith.constant 0 : index
    %c0_3 = arith.constant 0 : index
    %7 = vector.load %arg10[%c0_1, %c0_2, %c0_3] : memref<1x8x256xf32, #tpu.memory_space<vmem>>, vector<1x8x256xf32>
    %8 = vector.shape_cast %7 : vector<1x8x256xf32> to vector<8x256xf32>
    %9 = vector.shape_cast %6 : vector<8x256xf32> to vector<1x8x256xf32>
    tpu.vector_store %arg10[%c0_1, %c0_2, %c0_3], %9 {strides = array<i32>} : memref<1x8x256xf32, #tpu.memory_space<vmem>>, vector<1x8x256xf32>,
    %c0_4 = arith.constant 0 : index
    %c0_5 = arith.constant 0 : index
    %10 = arith.index_cast %4 : i32 to index
    %11 = vector.load %arg2[%c0_4, %c0_5, %10] : memref<1x4x256xf32, #tpu.memory_space<vmem>>, vector<1x4x256xf32>
    %12 = vector.shape_cast %11 : vector<1x4x256xf32> to vector<4x256xf32>
    %c0_6 = arith.constant 0 : index
    %c0_7 = arith.constant 0 : index
    %13 = vector.load %arg5[%c0_6, %c0_7] : memref<16x4xf32, #tpu.memory_space<vmem>>, vector<16x4xf32>
    %cst = arith.constant dense<0.000000e+00> : vector<16x256xf32>
    %14 = tpu.matmul %13, %12, %cst {dimension_numbers = #tpu.dot_dimension_numbers<[1], [0], [0], [1], [0, 0, 1, 1], [], []>} : vector<16x4xf32>, vector<4x256xf32>, vector<16x256xf32> -> vector<16x256xf32>
    %c0_8 = arith.constant 0 : index
    %c0_9 = arith.constant 0 : index
    %15 = vector.load %arg6[%c0_8, %c0_9] : memref<16x1xf32, #tpu.memory_space<vmem>>, vector<16x1xf32>
    %16 = vector.broadcast %15 : vector<16x1xf32> to vector<16x256xf32>
    %17 = arith.addf %14, %16 : vector<16x256xf32>
    %18 = vector.extract_strided_slice %17 {offsets = [0, 0], sizes = [8, 256], strides = [1, 1]} : vector<16x256xf32> to vector<8x256xf32>
    %19 = vector.extract_strided_slice %17 {offsets = [8, 0], sizes = [8, 256], strides = [1, 1]} : vector<16x256xf32> to vector<8x256xf32>
    %c0_10 = arith.constant 0 : index
    %c0_11 = arith.constant 0 : index
    %c0_12 = arith.constant 0 : index
    %20 = vector.load %arg12[%c0_10, %c0_11, %c0_12] : memref<2x4x256xf32, #tpu.memory_space<vmem>>, vector<1x4x256xf32>
    %21 = vector.shape_cast %20 : vector<1x4x256xf32> to vector<4x256xf32>
    %22 = vector.extract_strided_slice %18 {offsets = [0, 0], sizes = [4, 256], strides = [1, 1]} : vector<8x256xf32> to vector<4x256xf32>
    %cst_13 = arith.constant dense<0.000000e+00> : vector<256x256xf32>
    %23 = tpu.matmul %21, %22, %cst_13 {dimension_numbers = #tpu.dot_dimension_numbers<[0], [0], [1], [1], [0, 1, 1, 1], [], []>} : vector<4x256xf32>, vector<4x256xf32>, vector<256x256xf32> -> vector<256x256xf32>
    %cst_14 = arith.constant dense<0xFF800000> : vector<256xf32>
    %24 = vector.multi_reduction <maximumf>, %23, %cst_14 [0] : vector<256x256xf32> to vector<256xf32>
    %25 = vector.shape_cast %24 : vector<256xf32> to vector<1x256xf32>
    %26 = vector.broadcast %25 : vector<1x256xf32> to vector<256x256xf32>
    %27 = arith.subf %23, %26 : vector<256x256xf32>
    %28 = math.exp %27 : vector<256x256xf32>
    %cst_15 = arith.constant dense<0.000000e+00> : vector<256xf32>
    %29 = vector.multi_reduction <add>, %28, %cst_15 [0] : vector<256x256xf32> to vector<256xf32>
    %30 = vector.shape_cast %29 : vector<256xf32> to vector<1x256xf32>
    %31 = tpu.reciprocal %30 : vector<1x256xf32> -> vector<1x256xf32>
    %32 = vector.extract_strided_slice %19 {offsets = [0, 0], sizes = [4, 256], strides = [1, 1]} : vector<8x256xf32> to vector<4x256xf32>
    %33 = vector.broadcast %31 : vector<1x256xf32> to vector<4x256xf32>
    %34 = arith.mulf %32, %33 : vector<4x256xf32>
    %cst_16 = arith.constant dense<0.000000e+00> : vector<4x256xf32>
    %35 = tpu.matmul %34, %28, %cst_16 {dimension_numbers = #tpu.dot_dimension_numbers<[1], [1], [0], [0], [0, 0, 1, 0], [], []>} : vector<4x256xf32>, vector<256x256xf32>, vector<4x256xf32> -> vector<4x256xf32>
    %c0_17 = arith.constant 0 : index
    %c0_18 = arith.constant 0 : index
    %c0_19 = arith.constant 0 : index
    %36 = vector.load %arg13[%c0_17, %c0_18, %c0_19] : memref<2x4x256xf32, #tpu.memory_space<vmem>>, vector<1x4x256xf32>
    %37 = vector.shape_cast %36 : vector<1x4x256xf32> to vector<4x256xf32>
    %38 = arith.addf %37, %35 : vector<4x256xf32>
    %c0_20 = arith.constant 0 : index
    %c0_21 = arith.constant 0 : index
    %c0_22 = arith.constant 0 : index
    %39 = vector.load %arg13[%c0_20, %c0_21, %c0_22] : memref<2x4x256xf32, #tpu.memory_space<vmem>>, vector<1x4x256xf32>
    %40 = vector.shape_cast %39 : vector<1x4x256xf32> to vector<4x256xf32>
    %41 = vector.shape_cast %38 : vector<4x256xf32> to vector<1x4x256xf32>
    tpu.vector_store %arg13[%c0_20, %c0_21, %c0_22], %41 {strides = array<i32>} : memref<2x4x256xf32, #tpu.memory_space<vmem>>, vector<1x4x256xf32>,
    %c1 = arith.constant 1 : index
    %c0_23 = arith.constant 0 : index
    %c0_24 = arith.constant 0 : index
    %42 = vector.load %arg12[%c1, %c0_23, %c0_24] : memref<2x4x256xf32, #tpu.memory_space<vmem>>, vector<1x4x256xf32>
    %43 = vector.shape_cast %42 : vector<1x4x256xf32> to vector<4x256xf32>
    %44 = vector.extract_strided_slice %18 {offsets = [4, 0], sizes = [4, 256], strides = [1, 1]} : vector<8x256xf32> to vector<4x256xf32>
    %cst_25 = arith.constant dense<0.000000e+00> : vector<256x256xf32>
    %45 = tpu.matmul %43, %44, %cst_25 {dimension_numbers = #tpu.dot_dimension_numbers<[0], [0], [1], [1], [0, 1, 1, 1], [], []>} : vector<4x256xf32>, vector<4x256xf32>, vector<256x256xf32> -> vector<256x256xf32>
    %cst_26 = arith.constant dense<0xFF800000> : vector<256xf32>
    %46 = vector.multi_reduction <maximumf>, %45, %cst_26 [0] : vector<256x256xf32> to vector<256xf32>
    %47 = vector.shape_cast %46 : vector<256xf32> to vector<1x256xf32>
    %48 = vector.broadcast %47 : vector<1x256xf32> to vector<256x256xf32>
    %49 = arith.subf %45, %48 : vector<256x256xf32>
    %50 = math.exp %49 : vector<256x256xf32>
    %cst_27 = arith.constant dense<0.000000e+00> : vector<256xf32>
    %51 = vector.multi_reduction <add>, %50, %cst_27 [0] : vector<256x256xf32> to vector<256xf32>
    %52 = vector.shape_cast %51 : vector<256xf32> to vector<1x256xf32>
    %53 = tpu.reciprocal %52 : vector<1x256xf32> -> vector<1x256xf32>
    %54 = vector.extract_strided_slice %19 {offsets = [4, 0], sizes = [4, 256], strides = [1, 1]} : vector<8x256xf32> to vector<4x256xf32>
    %55 = vector.broadcast %53 : vector<1x256xf32> to vector<4x256xf32>
    %56 = arith.mulf %54, %55 : vector<4x256xf32>
    %cst_28 = arith.constant dense<0.000000e+00> : vector<4x256xf32>
    %57 = tpu.matmul %56, %50, %cst_28 {dimension_numbers = #tpu.dot_dimension_numbers<[1], [1], [0], [0], [0, 0, 1, 0], [], []>} : vector<4x256xf32>, vector<256x256xf32>, vector<4x256xf32> -> vector<4x256xf32>
    %c1_29 = arith.constant 1 : index
    %c0_30 = arith.constant 0 : index
    %c0_31 = arith.constant 0 : index
    %58 = vector.load %arg13[%c1_29, %c0_30, %c0_31] : memref<2x4x256xf32, #tpu.memory_space<vmem>>, vector<1x4x256xf32>
    %59 = vector.shape_cast %58 : vector<1x4x256xf32> to vector<4x256xf32>
    %60 = arith.addf %59, %57 : vector<4x256xf32>
    %c1_32 = arith.constant 1 : index
    %c0_33 = arith.constant 0 : index
    %c0_34 = arith.constant 0 : index
    %61 = vector.load %arg13[%c1_32, %c0_33, %c0_34] : memref<2x4x256xf32, #tpu.memory_space<vmem>>, vector<1x4x256xf32>
    %62 = vector.shape_cast %61 : vector<1x4x256xf32> to vector<4x256xf32>
    %63 = vector.shape_cast %60 : vector<4x256xf32> to vector<1x4x256xf32>
    tpu.vector_store %arg13[%c1_32, %c0_33, %c0_34], %63 {strides = array<i32>} : memref<2x4x256xf32, #tpu.memory_space<vmem>>, vector<1x4x256xf32>,
    %c0_i32_35 = arith.constant 0 : i32
    %64 = arith.cmpi eq, %arg1, %c0_i32_35 : i32
    %65 = arith.extui %64 : i1 to i32
    %c0_i32_36 = arith.constant 0 : i32
    %66 = arith.cmpi ne, %65, %c0_i32_36 : i32
    scf.if %66 {
      %c0_37 = arith.constant 0 : index
      %c0_38 = arith.constant 0 : index
      %c0_39 = arith.constant 0 : index
      %67 = vector.load %arg13[%c0_37, %c0_38, %c0_39] : memref<2x4x256xf32, #tpu.memory_space<vmem>>, vector<2x4x256xf32>
      %68 = vector.shape_cast %67 : vector<2x4x256xf32> to vector<8x256xf32>
      %c0_40 = arith.constant 0 : index
      %c0_41 = arith.constant 0 : index
      %69 = vector.load %arg7[%c0_40, %c0_41] : memref<8x8xf32, #tpu.memory_space<vmem>>, vector<8x8xf32>
      %cst_42 = arith.constant dense<0.000000e+00> : vector<8x256xf32>
      %70 = tpu.matmul %69, %68, %cst_42 {dimension_numbers = #tpu.dot_dimension_numbers<[1], [0], [0], [1], [0, 0, 1, 1], [], []>} : vector<8x8xf32>, vector<8x256xf32>, vector<8x256xf32> -> vector<8x256xf32>
      %c0_43 = arith.constant 0 : index
      %c0_44 = arith.constant 0 : index
      %71 = vector.load %arg8[%c0_43, %c0_44] : memref<8x1xf32, #tpu.memory_space<vmem>>, vector<8x1xf32>
      %72 = vector.broadcast %71 : vector<8x1xf32> to vector<8x256xf32>
      %73 = arith.addf %70, %72 : vector<8x256xf32>
      %c0_45 = arith.constant 0 : index
      %c0_46 = arith.constant 0 : index
      %c0_47 = arith.constant 0 : index
      %74 = vector.load %arg9[%c0_45, %c0_46, %c0_47] : memref<1x8x256xf32, #tpu.memory_space<vmem>>, vector<1x8x256xf32>
      %75 = vector.shape_cast %74 : vector<1x8x256xf32> to vector<8x256xf32>
      %76 = vector.shape_cast %73 : vector<8x256xf32> to vector<1x8x256xf32>
      tpu.vector_store %arg9[%c0_45, %c0_46, %c0_47], %76 {strides = array<i32>} : memref<1x8x256xf32, #tpu.memory_space<vmem>>, vector<1x8x256xf32>,
    } else {
    }
    return
  }
  func.func @transform_0(%arg0: i32, %arg1: i32) -> (i32, i32, i32) {
    %c0_i32 = arith.constant 0 : i32
    %c0_i32_0 = arith.constant 0 : i32
    %c0_i32_1 = arith.constant 0 : i32
    return %arg0, %c0_i32, %c0_i32_0 : i32, i32, i32
  }
  func.func @transform_1(%arg0: i32, %arg1: i32) -> (i32, i32) {
    %c0_i32 = arith.constant 0 : i32
    %c0_i32_0 = arith.constant 0 : i32
    %c0_i32_1 = arith.constant 0 : i32
    return %c0_i32, %c0_i32_0 : i32, i32
  }
  func.func @transform_2(%arg0: i32, %arg1: i32) -> (i32, i32) {
    %c0_i32 = arith.constant 0 : i32
    %c0_i32_0 = arith.constant 0 : i32
    %c0_i32_1 = arith.constant 0 : i32
    return %c0_i32, %c0_i32_0 : i32, i32
  }
  func.func @transform_3(%arg0: i32, %arg1: i32) -> (i32, i32) {
    %c0_i32 = arith.constant 0 : i32
    %c0_i32_0 = arith.constant 0 : i32
    %c0_i32_1 = arith.constant 0 : i32
    return %c0_i32, %c0_i32_0 : i32, i32
  }
  func.func @transform_4(%arg0: i32, %arg1: i32) -> (i32, i32) {
    %c0_i32 = arith.constant 0 : i32
    %c0_i32_0 = arith.constant 0 : i32
    %c0_i32_1 = arith.constant 0 : i32
    return %c0_i32, %c0_i32_0 : i32, i32
  }
  func.func @transform_5(%arg0: i32, %arg1: i32) -> (i32, i32) {
    %c0_i32 = arith.constant 0 : i32
    %c0_i32_0 = arith.constant 0 : i32
    %c0_i32_1 = arith.constant 0 : i32
    return %c0_i32, %c0_i32_0 : i32, i32
  }
  func.func @transform_6(%arg0: i32, %arg1: i32) -> (i32, i32) {
    %c0_i32 = arith.constant 0 : i32
    %c0_i32_0 = arith.constant 0 : i32
    %c0_i32_1 = arith.constant 0 : i32
    return %c0_i32, %c0_i32_0 : i32, i32
  }
  func.func @transform_7(%arg0: i32, %arg1: i32) -> (i32, i32, i32) {
    %c0_i32 = arith.constant 0 : i32
    %c0_i32_0 = arith.constant 0 : i32
    %c0_i32_1 = arith.constant 0 : i32
    return %arg0, %c0_i32, %c0_i32_0 : i32, i32, i32
  }
  func.func @transform_8(%arg0: i32, %arg1: i32) -> (i32, i32, i32) {
    %c0_i32 = arith.constant 0 : i32
    %c0_i32_0 = arith.constant 0 : i32
    return %arg0, %c0_i32, %arg1 : i32, i32, i32
  }
}

</mosaic_0001>

<llo_original>
// kernel: tpu_custom_call.1
$region0: #{tpu_custom_call.1}
  #allocation0 [shape = 'u32[]', space=smem, size = 0x4, offset = 0x4, fixed_abs, tag = 'smem constant byte address 0x4 - core index']
  #allocation1 [shape = 'u32[144,128]{1,0:T(1,128)}', space=vmem, size = 0x12000, scoped, tag = 'internal scratch']
  #allocation2 [shape = 'f32[8,256]{1,0:T(8,128)}', space=vmem, size = 0x2000, scoped, tag = 'scratch operand']
  #allocation3 [shape = 'f32[2,4,256]{2,1,0:T(4,128)}', space=vmem, size = 0x2000, scoped, tag = 'scratch operand']
  #allocation4 [shape = 'f32[2,4,256]{2,1,0:T(4,128)}', space=vmem, size = 0x2000, scoped, tag = 'scratch operand']
  %s0 = inlined_call_operand.vmem [shape: f32[2,4,256], index: 0, kind: input, shape index: {}]
  %s1 = inlined_call_operand.vmem [shape: f32[8,4], index: 1, kind: input, shape index: {}]
  %s2 = inlined_call_operand.vmem [shape: f32[8,1], index: 2, kind: input, shape index: {}]
  %s3 = inlined_call_operand.vmem [shape: f32[16,4], index: 3, kind: input, shape index: {}]
  %s4 = inlined_call_operand.vmem [shape: f32[16,1], index: 4, kind: input, shape index: {}]
  %s5 = inlined_call_operand.vmem [shape: f32[8,8], index: 5, kind: input, shape index: {}]
  %s6 = inlined_call_operand.vmem [shape: f32[8,1], index: 6, kind: input, shape index: {}]
  %s7 = inlined_call_operand.hbm [shape: f32[2,8,256], index: 7, kind: output, shape index: {0}]
  %s8 = inlined_call_operand.hbm [shape: f32[2,8,256], index: 8, kind: output, shape index: {1}]
  %9 = xla_tuple %s7, %s8
  %s10 = sld [smem:[#allocation0]]
  $region77: #{tpu_custom_call.1} parent=0
    _
  %s12 = ssub.s32 1, %s10
  %s13 = scalar_select 0, %s12, %s10
  $region1: #{tpu_custom_call.1} parent=0
    #allocation5 [shape = 'u8[16384]{0}', space=vmem, size = 0x4000, scoped, tag = 'output window, operand 0']
    #allocation6 [shape = 's32[2]{0}', space=sflag, size = 0x8, scoped, tag = 'scoped memory for tpu_custom_call.1']
    #allocation7 [shape = 'u8[16384]{0}', space=vmem, size = 0x4000, scoped, tag = 'output window, operand 1']
    #allocation8 [shape = 's32[2]{0}', space=sflag, size = 0x8, scoped, tag = 'scoped memory for tpu_custom_call.1']
    %14 = vsyncpa [#allocation6], 0
    %s15 = scalar_lea.sflag [#allocation6], 1
    %16 = vsyncpa %s15, 0
    %17 = vsyncpa [#allocation8], 0
    %s18 = scalar_lea.sflag [#allocation8], 1
    %19 = vsyncpa %s18, 0
    loop: start=0, step=1, limit=4
    $region2: #{tpu_custom_call.1} parent=1 // loop_pre_header
      _
    $region3: #{tpu_custom_call.1} parent=1 // loop_header
      %s21 = sphi 0, %s25
      %p22 = scmp.ge.s32.totalorder %s21, 4
      %s28 = sphi 0, %s40
      %s29 = sphi 0, %s36
      %s30 = sphi 0, %s28
      %s31 = sphi 0, %s29
      %s32 = sphi 0, %s30
      %s33 = sphi 0, %s31
      %s43 = sphi 0, %s45
      %s46 = sphi 0, %s43
      %s47 = sphi 0, %s46
      %s63 = sphi 0, %s47
      %s67 = sphi 0, %s67
      %s69 = sphi 0, %s67
      %s70 = sphi 0, %s69
      %s84 = sphi 0, %s70
      %s88 = sphi 0, %s88
      %s90 = sphi 0, %s88
      %s91 = sphi 0, %s90
      %s105 = sphi 0, %s91
      %s109 = sphi 0, %s109
      %s111 = sphi 0, %s109
      %s112 = sphi 0, %s111
      %s126 = sphi 0, %s112
      %s130 = sphi 0, %s130
      %s132 = sphi 0, %s130
      %s133 = sphi 0, %s132
      %s147 = sphi 0, %s133
      %s151 = sphi 0, %s151
      %s153 = sphi 0, %s151
      %s154 = sphi 0, %s153
      %s168 = sphi 0, %s154
      %s172 = sphi 0, %s172
      %s174 = sphi 0, %s172
      %s175 = sphi 0, %s174
      %s189 = sphi 0, %s175
      %s195 = sphi 0, %s197
      %s198 = sphi 0, %s195
      %s199 = sphi 0, %s198
      %s215 = sphi 0, %s199
      %s223 = sphi 0, %s225
      %s226 = sphi 0, %s223
      %s227 = sphi 0, %s226
      %s243 = sphi 0, %s227
    $region4: #{tpu_custom_call.1} parent=1 // loop_header_branch
      %24 = sbr.rel (%p22) target = $region8
    $region5: #{tpu_custom_call.1} parent=1 // loop_body
      %s26 = ssub.s32 %s21, 1
      %s27 = ssub.s32 %s21, 2
      %s34 = sadd.s32 1, %s29
      %p35 = scmp.ge.s32.totalorder %s34, 1
      %s36 = scalar_select %p35, 0, %s34
      %s37 = sadd.s32 1, %s28
      %s38 = scalar_select %p35, %s37, %s28
      %p39 = scmp.ge.s32.totalorder %s38, 2
      %s40 = scalar_select %p39, 0, %s38
      %s41 = ssub.s32 %s28, %s40
      %p42 = scmp.eq.s32.totalorder %s41, 0
      %s44 = sadd.s32 %s43, 1
      %s45 = scalar_select %p42, %s43, %s44
      %p48 = pneg %p42
      %p49 = scmp.eq.s32.totalorder %s21, 1
      %p50 = por %p48, %p49
      %p51 = scmp.ne.s32.totalorder %s43, %s46
      %p52 = scmp.eq.s32.totalorder %s21, 0
      %p53 = por %p51, %p52
      %p54 = scmp.ne.s32.totalorder %s43, %s46
      %p55 = scmp.eq.s32.totalorder %s26, 1
      %p56 = por %p54, %p55
      %p57 = scmp.ne.s32.totalorder %s46, %s47
      %p58 = scmp.eq.s32.totalorder %s26, 0
      %p59 = por %p57, %p58
      %p60 = scmp.ne.s32.totalorder %s46, %s47
      %p61 = scmp.eq.s32.totalorder %s27, 1
      %p62 = por %p60, %p61
      %p64 = scmp.ne.s32.totalorder %s47, %s63
      %p65 = scmp.eq.s32.totalorder %s27, 0
      %p66 = por %p64, %p65
      %s68 = sadd.s32 %s67, 1
      %p71 = scmp.eq.s32.totalorder %s21, 1
      %p72 = scmp.ne.s32.totalorder %s67, %s69
      %p73 = scmp.eq.s32.totalorder %s21, 0
      %p74 = por %p72, %p73
      %p75 = scmp.ne.s32.totalorder %s67, %s69
      %p76 = scmp.eq.s32.totalorder %s26, 1
      %p77 = por %p75, %p76
      %p78 = scmp.ne.s32.totalorder %s69, %s70
      %p79 = scmp.eq.s32.totalorder %s26, 0
      %p80 = por %p78, %p79
      %p81 = scmp.ne.s32.totalorder %s69, %s70
      %p82 = scmp.eq.s32.totalorder %s27, 1
      %p83 = por %p81, %p82
      %p85 = scmp.ne.s32.totalorder %s70, %s84
      %p86 = scmp.eq.s32.totalorder %s27, 0
      %p87 = por %p85, %p86
      %s89 = sadd.s32 %s88, 1
      %p92 = scmp.eq.s32.totalorder %s21, 1
      %p93 = scmp.ne.s32.totalorder %s88, %s90
      %p94 = scmp.eq.s32.totalorder %s21, 0
      %p95 = por %p93, %p94
      %p96 = scmp.ne.s32.totalorder %s88, %s90
      %p97 = scmp.eq.s32.totalorder %s26, 1
      %p98 = por %p96, %p97
      %p99 = scmp.ne.s32.totalorder %s90, %s91
      %p100 = scmp.eq.s32.totalorder %s26, 0
      %p101 = por %p99, %p100
      %p102 = scmp.ne.s32.totalorder %s90, %s91
      %p103 = scmp.eq.s32.totalorder %s27, 1
      %p104 = por %p102, %p103
      %p106 = scmp.ne.s32.totalorder %s91, %s105
      %p107 = scmp.eq.s32.totalorder %s27, 0
      %p108 = por %p106, %p107
      %s110 = sadd.s32 %s109, 1
      %p113 = scmp.eq.s32.totalorder %s21, 1
      %p114 = scmp.ne.s32.totalorder %s109, %s111
      %p115 = scmp.eq.s32.totalorder %s21, 0
      %p116 = por %p114, %p115
      %p117 = scmp.ne.s32.totalorder %s109, %s111
      %p118 = scmp.eq.s32.totalorder %s26, 1
      %p119 = por %p117, %p118
      %p120 = scmp.ne.s32.totalorder %s111, %s112
      %p121 = scmp.eq.s32.totalorder %s26, 0
      %p122 = por %p120, %p121
      %p123 = scmp.ne.s32.totalorder %s111, %s112
      %p124 = scmp.eq.s32.totalorder %s27, 1
      %p125 = por %p123, %p124
      %p127 = scmp.ne.s32.totalorder %s112, %s126
      %p128 = scmp.eq.s32.totalorder %s27, 0
      %p129 = por %p127, %p128
      %s131 = sadd.s32 %s130, 1
      %p134 = scmp.eq.s32.totalorder %s21, 1
      %p135 = scmp.ne.s32.totalorder %s130, %s132
      %p136 = scmp.eq.s32.totalorder %s21, 0
      %p137 = por %p135, %p136
      %p138 = scmp.ne.s32.totalorder %s130, %s132
      %p139 = scmp.eq.s32.totalorder %s26, 1
      %p140 = por %p138, %p139
      %p141 = scmp.ne.s32.totalorder %s132, %s133
      %p142 = scmp.eq.s32.totalorder %s26, 0
      %p143 = por %p141, %p142
      %p144 = scmp.ne.s32.totalorder %s132, %s133
      %p145 = scmp.eq.s32.totalorder %s27, 1
      %p146 = por %p144, %p145
      %p148 = scmp.ne.s32.totalorder %s133, %s147
      %p149 = scmp.eq.s32.totalorder %s27, 0
      %p150 = por %p148, %p149
      %s152 = sadd.s32 %s151, 1
      %p155 = scmp.eq.s32.totalorder %s21, 1
      %p156 = scmp.ne.s32.totalorder %s151, %s153
      %p157 = scmp.eq.s32.totalorder %s21, 0
      %p158 = por %p156, %p157
      %p159 = scmp.ne.s32.totalorder %s151, %s153
      %p160 = scmp.eq.s32.totalorder %s26, 1
      %p161 = por %p159, %p160
      %p162 = scmp.ne.s32.totalorder %s153, %s154
      %p163 = scmp.eq.s32.totalorder %s26, 0
      %p164 = por %p162, %p163
      %p165 = scmp.ne.s32.totalorder %s153, %s154
      %p166 = scmp.eq.s32.totalorder %s27, 1
      %p167 = por %p165, %p166
      %p169 = scmp.ne.s32.totalorder %s154, %s168
      %p170 = scmp.eq.s32.totalorder %s27, 0
      %p171 = por %p169, %p170
      %s173 = sadd.s32 %s172, 1
      %p176 = scmp.eq.s32.totalorder %s21, 1
      %p177 = scmp.ne.s32.totalorder %s172, %s174
      %p178 = scmp.eq.s32.totalorder %s21, 0
      %p179 = por %p177, %p178
      %p180 = scmp.ne.s32.totalorder %s172, %s174
      %p181 = scmp.eq.s32.totalorder %s26, 1
      %p182 = por %p180, %p181
      %p183 = scmp.ne.s32.totalorder %s174, %s175
      %p184 = scmp.eq.s32.totalorder %s26, 0
      %p185 = por %p183, %p184
      %p186 = scmp.ne.s32.totalorder %s174, %s175
      %p187 = scmp.eq.s32.totalorder %s27, 1
      %p188 = por %p186, %p187
      %p190 = scmp.ne.s32.totalorder %s175, %s189
      %p191 = scmp.eq.s32.totalorder %s27, 0
      %p192 = por %p190, %p191
      %s193 = ssub.s32 %s28, %s40
      %p194 = scmp.eq.s32.totalorder %s193, 0
      %s196 = sadd.s32 %s195, 1
      %s197 = scalar_select %p194, %s195, %s196
      %p200 = pneg %p194
      %p201 = scmp.eq.s32.totalorder %s21, 1
      %p202 = por %p200, %p201
      %p203 = scmp.ne.s32.totalorder %s195, %s198
      %p204 = scmp.eq.s32.totalorder %s21, 0
      %p205 = por %p203, %p204
      %p206 = scmp.ne.s32.totalorder %s195, %s198
      %p207 = scmp.eq.s32.totalorder %s26, 1
      %p208 = por %p206, %p207
      %p209 = scmp.ne.s32.totalorder %s198, %s199
      %p210 = scmp.eq.s32.totalorder %s26, 0
      %p211 = por %p209, %p210
      %p212 = scmp.ne.s32.totalorder %s198, %s199
      %p213 = scmp.eq.s32.totalorder %s27, 1
      %p214 = por %p212, %p213
      %p216 = scmp.ne.s32.totalorder %s199, %s215
      %p217 = scmp.eq.s32.totalorder %s27, 0
      %p218 = por %p216, %p217
      %s219 = ssub.s32 %s28, %s40
      %s220 = ssub.s32 %s29, %s36
      %s221 = sor.u32 %s219, %s220
      %p222 = scmp.eq.s32.totalorder %s221, 0
      %s224 = sadd.s32 %s223, 1
      %s225 = scalar_select %p222, %s223, %s224
      %p228 = pneg %p222
      %p229 = scmp.eq.s32.totalorder %s21, 1
      %p230 = por %p228, %p229
      %p231 = scmp.ne.s32.totalorder %s223, %s226
      %p232 = scmp.eq.s32.totalorder %s21, 0
      %p233 = por %p231, %p232
      %p234 = scmp.ne.s32.totalorder %s223, %s226
      %p235 = scmp.eq.s32.totalorder %s26, 1
      %p236 = por %p234, %p235
      %p237 = scmp.ne.s32.totalorder %s226, %s227
      %p238 = scmp.eq.s32.totalorder %s26, 0
      %p239 = por %p237, %p238
      %p240 = scmp.ne.s32.totalorder %s226, %s227
      %p241 = scmp.eq.s32.totalorder %s27, 1
      %p242 = por %p240, %p241
      %p244 = scmp.ne.s32.totalorder %s227, %s243
      %p245 = scmp.eq.s32.totalorder %s27, 0
      %p246 = por %p244, %p245
      %p247 = scmp.le.s32.totalorder 1, %s21
      %p248 = scmp.lt.s32.totalorder %s21, 3
      %p249 = pnand %p247, %p248
      %p250 = pneg %p249
      // Predicated region
      $region9: #{tpu_custom_call.1} parent=5 // pred_check
        _
      $region10: #{tpu_custom_call.1} parent=5 // pred_check_branch
        %252 = sbr.rel (%p249) target = $region12
      $region11: #{tpu_custom_call.1} parent=5 // pred_region
        %s253 = ssub.s32 %s21, 1
        // Predicated region
        $region13: #{tpu_custom_call.1} parent=11 // pred_check
          %p254 = pneg %p80
        $region14: #{tpu_custom_call.1} parent=11 // pred_check_branch
          %256 = sbr.rel (%p254) target = $region16
        $region15: #{tpu_custom_call.1} parent=11 // pred_region
          _
        $region16: #{tpu_custom_call.1} parent=11 // pred_fallthru
          _
        // Predicated region
        $region17: #{tpu_custom_call.1} parent=11 // pred_check
          %p257 = pneg %p101
        $region18: #{tpu_custom_call.1} parent=11 // pred_check_branch
          %259 = sbr.rel (%p257) target = $region20
        $region19: #{tpu_custom_call.1} parent=11 // pred_region
          _
        $region20: #{tpu_custom_call.1} parent=11 // pred_fallthru
          _
        // Predicated region
        $region21: #{tpu_custom_call.1} parent=11 // pred_check
          %p260 = pneg %p122
        $region22: #{tpu_custom_call.1} parent=11 // pred_check_branch
          %262 = sbr.rel (%p260) target = $region24
        $region23: #{tpu_custom_call.1} parent=11 // pred_region
          _
        $region24: #{tpu_custom_call.1} parent=11 // pred_fallthru
          _
        // Predicated region
        $region25: #{tpu_custom_call.1} parent=11 // pred_check
          %p263 = pneg %p143
        $region26: #{tpu_custom_call.1} parent=11 // pred_check_branch
          %265 = sbr.rel (%p263) target = $region28
        $region27: #{tpu_custom_call.1} parent=11 // pred_region
          _
        $region28: #{tpu_custom_call.1} parent=11 // pred_fallthru
          _
        // Predicated region
        $region29: #{tpu_custom_call.1} parent=11 // pred_check
          %p266 = pneg %p164
        $region30: #{tpu_custom_call.1} parent=11 // pred_check_branch
          %268 = sbr.rel (%p266) target = $region32
        $region31: #{tpu_custom_call.1} parent=11 // pred_region
          _
        $region32: #{tpu_custom_call.1} parent=11 // pred_fallthru
          _
        // Predicated region
        $region33: #{tpu_custom_call.1} parent=11 // pred_check
          %p269 = pneg %p185
        $region34: #{tpu_custom_call.1} parent=11 // pred_check_branch
          %271 = sbr.rel (%p269) target = $region36
        $region35: #{tpu_custom_call.1} parent=11 // pred_region
          _
        $region36: #{tpu_custom_call.1} parent=11 // pred_fallthru
          _
      $region12: #{tpu_custom_call.1} parent=5 // pred_fallthru
        _
      %p272 = scmp.lt.s32.totalorder %s21, 2
      // Predicated region
      $region37: #{tpu_custom_call.1} parent=5 // pred_check
        %p273 = pneg %p272
      $region38: #{tpu_custom_call.1} parent=5 // pred_check_branch
        %275 = sbr.rel (%p273) target = $region40
      $region39: #{tpu_custom_call.1} parent=5 // pred_region
        // Predicated region
        $region41: #{tpu_custom_call.1} parent=39 // pred_check
          %p276 = pneg %p53
        $region42: #{tpu_custom_call.1} parent=39 // pred_check_branch
          %278 = sbr.rel (%p276) target = $region44
        $region43: #{tpu_custom_call.1} parent=39 // pred_region
          %p279 = scmp.lt.s32.totalorder %s28, 1
          %s280 = scalar_select %p279, %s28, 1
          %s281 = smul.addr %s280, 2
          %s282 = smul.addr %s281, 4
          %s283 = scalar_lea.vmem %s0, %s282
        $region44: #{tpu_custom_call.1} parent=39 // pred_fallthru
          _
      $region40: #{tpu_custom_call.1} parent=5 // pred_fallthru
        _
      %p284 = scmp.le.s32.totalorder 1, %s21
      %p285 = scmp.lt.s32.totalorder %s21, 3
      %p286 = pnand %p284, %p285
      %p287 = pneg %p286
      // Predicated region
      $region45: #{tpu_custom_call.1} parent=5 // pred_check
        _
      $region46: #{tpu_custom_call.1} parent=5 // pred_check_branch
        %289 = sbr.rel (%p286) target = $region48
      $region47: #{tpu_custom_call.1} parent=5 // pred_region
        %s290 = ssub.s32 %s21, 1
        %p291 = scmp.lt.s32.totalorder %s30, 1
        %s292 = scalar_select %p291, %s30, 1
        %s293 = smul.addr %s292, 2
        %s294 = smul.addr %s293, 4
        %s295 = scalar_lea.vmem %s0, %s294
        %p296 = pneg %p59
        %p297 = pneg %p56
        %p298 = pneg %p80
        %p299 = pneg %p77
        %p300 = pneg %p101
        %p301 = pneg %p98
        %p302 = pneg %p122
        %p303 = pneg %p119
        %p304 = pneg %p143
        %p305 = pneg %p140
        %p306 = pneg %p164
        %p307 = pneg %p161
        %p308 = pneg %p185
        %p309 = pneg %p182
        %p310 = pneg %p211
        %p311 = pneg %p208
        %s312 = sand.u32 %s198, 1
        %s313 = scalar_lea.sflag [#allocation6], %s312
        %s314 = sand.u32 %s198, 1
        %s315 = smul.addr %s314, 16
        %s316 = scalar_lea.vmem [#allocation5], %s315
        %p317 = pneg %p239
        %p318 = pneg %p236
        %s319 = sand.u32 %s226, 1
        %s320 = scalar_lea.sflag [#allocation8], %s319
        %s321 = sand.u32 %s226, 1
        %s322 = smul.addr %s321, 16
        %s323 = scalar_lea.vmem [#allocation7], %s322
        %p324 = scmp.lt.s32.totalorder %s30, 1
        %s325 = scalar_select %p324, %s30, 1
        %s326 = smul.addr %s325, 2
        %s327 = smul.addr %s326, 4
        %s328 = scalar_lea.vmem %s0, %s327
        %s329 = smul.u32 2, %s31
        %p330 = scmp.eq.s32.totalorder %s31, 0
        // Predicated region
        $region49: #{tpu_custom_call.1} parent=47 // pred_check
          %p331 = pneg %p330
        $region50: #{tpu_custom_call.1} parent=47 // pred_check_branch
          %333 = sbr.rel (%p331) target = $region52
        $region51: #{tpu_custom_call.1} parent=47 // pred_region
          %v334 = vld [vmem:[%s328] sm:$0xff]
          %v335 = vld [vmem:[%s1] sm:$0xff]
          %v336 = vld [vmem:[%s2] sm:$0xff]
          %338 = vset.pattern.permute.xlu0 0
          %339 = vperm.xlu0 %338, %v336
          %v340 = vpop.permute.xlu0 %339
          %v343 = vcombine.high %v334, %v334
          %vm344 = vcmask 31744
          %v346 = vsel %vm344, %v335, 0
          %vm348 = vcmask 1043456
          %v349 = vsel %vm348, %v334, 0
          %v351 = vsel %vm348, %v343, 0
          %353 = vmatprep.subr.mxu0 %v351
          %354 = vmatpush1.msra.mxu0 %v349
          %355 = vmatprep.subr.mxu0 0.0
          %356 = vmatpush1.msra.mxu0 0.0
          %357 = vmatprep.subr.mxu0 0.0
          %358 = vmatpush1.msra.mxu0 0.0
          %359 = vmatprep.subr.mxu0 0.0
          %360 = vmatpush1.msra.mxu0 0.0
          %361 = vmatprep.subr.mxu0 0.0
          %362 = vmatpush1.msra.mxu0 0.0
          %363 = vmatprep.subr.mxu0 0.0
          %364 = vmatpush1.msra.mxu0 0.0
          %365 = vmatprep.subr.mxu0 0.0
          %366 = vmatpush1.msra.mxu0 0.0
          %367 = vmatprep.subr.mxu0 0.0
          %368 = vmatpush1.msra.mxu0 0.0
          %369 = vmatprep.subr.mxu0 0.0
          %370 = vmatpush1.msra.mxu0 0.0
          %371 = vmatprep.subr.mxu0 0.0
          %372 = vmatpush1.msra.mxu0 0.0
          %373 = vmatprep.subr.mxu0 0.0
          %374 = vmatpush1.msra.mxu0 0.0
          %375 = vmatprep.subr.mxu0 0.0
          %376 = vmatpush1.msra.mxu0 0.0
          %377 = vmatprep.subr.mxu0 0.0
          %378 = vmatpush1.msra.mxu0 0.0
          %379 = vmatprep.subr.mxu0 0.0
          %380 = vmatpush1.msra.mxu0 0.0
          %381 = vmatprep.subr.mxu0 0.0
          %382 = vmatpush1.msra.mxu0 0.0
          %383 = vmatprep.subr.mxu0 0.0
          %384 = vmatpush1.msra.mxu0 0.0
          %385 = vmatprep.subr.mxu0 0.0
          %386 = vmatpush1.msra.mxu0 0.0
          %387 = vmatprep.subr.mxu0 0.0
          %388 = vmatpush1.msra.mxu0 0.0
          %389 = vmatprep.subr.mxu0 0.0
          %390 = vmatpush1.msra.mxu0 0.0
          %391 = vmatprep.subr.mxu0 0.0
          %392 = vmatpush1.msra.mxu0 0.0
          %393 = vmatprep.subr.mxu0 0.0
          %394 = vmatpush1.msra.mxu0 0.0
          %395 = vmatprep.subr.mxu0 0.0
          %396 = vmatpush1.msra.mxu0 0.0
          %397 = vmatprep.subr.mxu0 0.0
          %398 = vmatpush1.msra.mxu0 0.0
          %399 = vmatprep.subr.mxu0 0.0
          %400 = vmatpush1.msra.mxu0 0.0
          %401 = vmatprep.subr.mxu0 0.0
          %402 = vmatpush1.msra.mxu0 0.0
          %403 = vmatprep.subr.mxu0 0.0
          %404 = vmatpush1.msra.mxu0 0.0
          %405 = vmatprep.subr.mxu0 0.0
          %406 = vmatpush1.msra.mxu0 0.0
          %407 = vmatprep.subr.mxu0 0.0
          %408 = vmatpush1.msra.mxu0 0.0
          %409 = vmatprep.subr.mxu0 0.0
          %410 = vmatpush1.msra.mxu0 0.0
          %411 = vmatprep.subr.mxu0 0.0
          %412 = vmatpush1.msra.mxu0 0.0
          %413 = vmatprep.subr.mxu0 0.0
          %414 = vmatpush1.msra.mxu0 0.0
          %415 = vmatprep.subr.mxu0 0.0
          %416 = vmatpush1.msra.mxu0 0.0
          %417 = vmatprep.mubr.f32.mxu0 0.0
          %418 = vmatmul.mubr.f32.gmra.mrb[0].mxu0 %v346
          %v419 = vpop.f32.mrb[0].mxu0
          %v420 = vadd.f32 %v340, %v419
          %v421 = vpop.f32.mrb[0].mxu0
          %v422 = vadd.f32 %v340, %v421
          %423 = vdwg.mxu0
          %v424 = vmul.f32 %v420, 0.5
          %v425 = vmul.f32 %v422, 0.5
          %426 = vst [vmem:[#allocation2] sm:$0xff] %v424
          %427 = vst [vmem:[#allocation2 + $0x8] sm:$0xff] %v425
          %v430 = vcombine.low %v424, %v425
          %v431 = vcombine.high %v424, %v425
          %434 = vst [vmem:[#allocation3] sm:$0xff] %v430
          %435 = vst [vmem:[#allocation3 + $0x8] sm:$0xff] %v431
          %436 = vst [vmem:[#allocation4] sm:$0xff] 0.0
          %437 = vst [vmem:[#allocation4 + $0x8] sm:$0xff] 0.0
        $region52: #{tpu_custom_call.1} parent=47 // pred_fallthru
          _
        %s438 = smul.u32 %s31, 256
        %s439 = sshra.s32 %s438, 7
        %s440 = sand.u32 %s438, 127
        %s441 = smul.addr %s439, 8
        %s442 = scalar_lea.vmem [#allocation2], %s441
        %v443 = vld [vmem:[%s442] sm:$0xff]
        %v444 = vld [vmem:[%s442 + $0x8] sm:$0xff]
        %445 = vst [vmem:[%s323] sm:$0xff] %v443
        %446 = vst [vmem:[%s323 + $0x8] sm:$0xff] %v444
        %s447 = smul.addr %s439, 4
        %s448 = scalar_lea.vmem %s328, %s447
        %v449 = vld [vmem:[%s448] sm:$0xff]
        %v450 = vld [vmem:[%s3] sm:$0xff]
        %v451 = vld [vmem:[%s3 + $0x8] sm:$0xff]
        %v452 = vld [vmem:[%s4] sm:$0xff]
        %v453 = vld [vmem:[%s4 + $0x8] sm:$0xff]
        %455 = vset.pattern.permute.xlu0 0
        %456 = vperm.xlu0 %455, %v452
        %v457 = vpop.permute.xlu0 %456
        %460 = vset.pattern.permute.xlu0 0
        %461 = vperm.xlu0 %460, %v453
        %v462 = vpop.permute.xlu0 %461
        %v465 = vcombine.high %v449, %v449
        %vm466 = vcmask 31744
        %v468 = vsel %vm466, %v450, 0
        %v471 = vsel %vm466, %v451, 0
        %vm473 = vcmask 1043456
        %v474 = vsel %vm473, %v449, 0
        %v476 = vsel %vm473, %v465, 0
        %478 = vmatprep.subr.mxu0 %v476
        %479 = vmatpush1.msra.mxu0 %v474
        %480 = vmatprep.subr.mxu0 0.0
        %481 = vmatpush1.msra.mxu0 0.0
        %482 = vmatprep.subr.mxu0 0.0
        %483 = vmatpush1.msra.mxu0 0.0
        %484 = vmatprep.subr.mxu0 0.0
        %485 = vmatpush1.msra.mxu0 0.0
        %486 = vmatprep.subr.mxu0 0.0
        %487 = vmatpush1.msra.mxu0 0.0
        %488 = vmatprep.subr.mxu0 0.0
        %489 = vmatpush1.msra.mxu0 0.0
        %490 = vmatprep.subr.mxu0 0.0
        %491 = vmatpush1.msra.mxu0 0.0
        %492 = vmatprep.subr.mxu0 0.0
        %493 = vmatpush1.msra.mxu0 0.0
        %494 = vmatprep.subr.mxu0 0.0
        %495 = vmatpush1.msra.mxu0 0.0
        %496 = vmatprep.subr.mxu0 0.0
        %497 = vmatpush1.msra.mxu0 0.0
        %498 = vmatprep.subr.mxu0 0.0
        %499 = vmatpush1.msra.mxu0 0.0
        %500 = vmatprep.subr.mxu0 0.0
        %501 = vmatpush1.msra.mxu0 0.0
        %502 = vmatprep.subr.mxu0 0.0
        %503 = vmatpush1.msra.mxu0 0.0
        %504 = vmatprep.subr.mxu0 0.0
        %505 = vmatpush1.msra.mxu0 0.0
        %506 = vmatprep.subr.mxu0 0.0
        %507 = vmatpush1.msra.mxu0 0.0
        %508 = vmatprep.subr.mxu0 0.0
        %509 = vmatpush1.msra.mxu0 0.0
        %510 = vmatprep.subr.mxu0 0.0
        %511 = vmatpush1.msra.mxu0 0.0
        %512 = vmatprep.subr.mxu0 0.0
        %513 = vmatpush1.msra.mxu0 0.0
        %514 = vmatprep.subr.mxu0 0.0
        %515 = vmatpush1.msra.mxu0 0.0
        %516 = vmatprep.subr.mxu0 0.0
        %517 = vmatpush1.msra.mxu0 0.0
        %518 = vmatprep.subr.mxu0 0.0
        %519 = vmatpush1.msra.mxu0 0.0
        %520 = vmatprep.subr.mxu0 0.0
        %521 = vmatpush1.msra.mxu0 0.0
        %522 = vmatprep.subr.mxu0 0.0
        %523 = vmatpush1.msra.mxu0 0.0
        %524 = vmatprep.subr.mxu0 0.0
        %525 = vmatpush1.msra.mxu0 0.0
        %526 = vmatprep.subr.mxu0 0.0
        %527 = vmatpush1.msra.mxu0 0.0
        %528 = vmatprep.subr.mxu0 0.0
        %529 = vmatpush1.msra.mxu0 0.0
        %530 = vmatprep.subr.mxu0 0.0
        %531 = vmatpush1.msra.mxu0 0.0
        %532 = vmatprep.subr.mxu0 0.0
        %533 = vmatpush1.msra.mxu0 0.0
        %534 = vmatprep.subr.mxu0 0.0
        %535 = vmatpush1.msra.mxu0 0.0
        %536 = vmatprep.subr.mxu0 0.0
        %537 = vmatpush1.msra.mxu0 0.0
        %538 = vmatprep.subr.mxu0 0.0
        %539 = vmatpush1.msra.mxu0 0.0
        %540 = vmatprep.subr.mxu0 0.0
        %541 = vmatpush1.msra.mxu0 0.0
        %542 = vmatprep.mubr.f32.mxu0 0.0
        %543 = vmatmul.mubr.f32.gmra.mrb[0].mxu0 %v468
        %v544 = vpop.f32.mrb[0].mxu0
        %v545 = vadd.f32 %v457, %v544
        %v546 = vpop.f32.mrb[0].mxu0
        %v547 = vadd.f32 %v457, %v546
        %548 = vmatprep.mubr.f32.mxu0 0.0
        %549 = vmatmul.mubr.f32.gmra.mrb[0].mxu0 %v471
        %v550 = vpop.f32.mrb[0].mxu0
        %v551 = vadd.f32 %v462, %v550
        %v552 = vpop.f32.mrb[0].mxu0
        %v553 = vadd.f32 %v462, %v552
        %554 = vdwg.mxu0
        %v555 = vld [vmem:[#allocation3] sm:$0xff]
        %v557 = vcombine.high %v555, %v555
        %559 = vxpose.xlu0.b32.start [1/16] %v555, 128
        %560 = vxpose.xlu0.b32.cont [2/16] 0.0, 128
        %561 = vxpose.xlu0.b32.cont [3/16] 0.0, 128
        %562 = vxpose.xlu0.b32.cont [4/16] 0.0, 128
        %563 = vxpose.xlu0.b32.cont [5/16] 0.0, 128
        %564 = vxpose.xlu0.b32.cont [6/16] 0.0, 128
        %565 = vxpose.xlu0.b32.cont [7/16] 0.0, 128
        %566 = vxpose.xlu0.b32.cont [8/16] 0.0, 128
        %567 = vxpose.xlu0.b32.cont [9/16] 0.0, 128
        %568 = vxpose.xlu0.b32.cont [10/16] 0.0, 128
        %569 = vxpose.xlu0.b32.cont [11/16] 0.0, 128
        %570 = vxpose.xlu0.b32.cont [12/16] 0.0, 128
        %571 = vxpose.xlu0.b32.cont [13/16] 0.0, 128
        %572 = vxpose.xlu0.b32.cont [14/16] 0.0, 128
        %573 = vxpose.xlu0.b32.cont [15/16] 0.0, 128
        %574 = vxpose.xlu0.b32.end [16/16] 0.0, 128
        %v575 = vpop.trf.xlu0
        %v576 = vpop.trf.xlu0
        %v577 = vpop.trf.xlu0
        %v578 = vpop.trf.xlu0
        %v579 = vpop.trf.xlu0
        %v580 = vpop.trf.xlu0
        %v581 = vpop.trf.xlu0
        %v582 = vpop.trf.xlu0
        %v583 = vpop.trf.xlu0
        %v584 = vpop.trf.xlu0
        %v585 = vpop.trf.xlu0
        %v586 = vpop.trf.xlu0
        %v587 = vpop.trf.xlu0
        %v588 = vpop.trf.xlu0
        %v589 = vpop.trf.xlu0
        %v590 = vpop.trf.xlu0
        %591 = vxpose.xlu0.b32.start [1/16] %v557, 128
        %592 = vxpose.xlu0.b32.cont [2/16] 0.0, 128
        %593 = vxpose.xlu0.b32.cont [3/16] 0.0, 128
        %594 = vxpose.xlu0.b32.cont [4/16] 0.0, 128
        %595 = vxpose.xlu0.b32.cont [5/16] 0.0, 128
        %596 = vxpose.xlu0.b32.cont [6/16] 0.0, 128
        %597 = vxpose.xlu0.b32.cont [7/16] 0.0, 128
        %598 = vxpose.xlu0.b32.cont [8/16] 0.0, 128
        %599 = vxpose.xlu0.b32.cont [9/16] 0.0, 128
        %600 = vxpose.xlu0.b32.cont [10/16] 0.0, 128
        %601 = vxpose.xlu0.b32.cont [11/16] 0.0, 128
        %602 = vxpose.xlu0.b32.cont [12/16] 0.0, 128
        %603 = vxpose.xlu0.b32.cont [13/16] 0.0, 128
        %604 = vxpose.xlu0.b32.cont [14/16] 0.0, 128
        %605 = vxpose.xlu0.b32.cont [15/16] 0.0, 128
        %606 = vxpose.xlu0.b32.end [16/16] 0.0, 128
        %v607 = vpop.trf.xlu0
        %v608 = vpop.trf.xlu0
        %v609 = vpop.trf.xlu0
        %v610 = vpop.trf.xlu0
        %v611 = vpop.trf.xlu0
        %v612 = vpop.trf.xlu0
        %v613 = vpop.trf.xlu0
        %v614 = vpop.trf.xlu0
        %v615 = vpop.trf.xlu0
        %v616 = vpop.trf.xlu0
        %v617 = vpop.trf.xlu0
        %v618 = vpop.trf.xlu0
        %v619 = vpop.trf.xlu0
        %v620 = vpop.trf.xlu0
        %v621 = vpop.trf.xlu0
        %v622 = vpop.trf.xlu0
        %v624 = vsel %vm466, %v575, 0
        %v627 = vsel %vm466, %v576, 0
        %v630 = vsel %vm466, %v577, 0
        %v633 = vsel %vm466, %v578, 0
        %v636 = vsel %vm466, %v579, 0
        %v639 = vsel %vm466, %v580, 0
        %v642 = vsel %vm466, %v581, 0
        %v645 = vsel %vm466, %v582, 0
        %v648 = vsel %vm466, %v583, 0
        %v651 = vsel %vm466, %v584, 0
        %v654 = vsel %vm466, %v585, 0
        %v657 = vsel %vm466, %v586, 0
        %v660 = vsel %vm466, %v587, 0
        %v663 = vsel %vm466, %v588, 0
        %v666 = vsel %vm466, %v589, 0
        %v669 = vsel %vm466, %v590, 0
        %v672 = vsel %vm466, %v607, 0
        %v675 = vsel %vm466, %v608, 0
        %v678 = vsel %vm466, %v609, 0
        %v681 = vsel %vm466, %v610, 0
        %v684 = vsel %vm466, %v611, 0
        %v687 = vsel %vm466, %v612, 0
        %v690 = vsel %vm466, %v613, 0
        %v693 = vsel %vm466, %v614, 0
        %v696 = vsel %vm466, %v615, 0
        %v699 = vsel %vm466, %v616, 0
        %v702 = vsel %vm466, %v617, 0
        %v705 = vsel %vm466, %v618, 0
        %v708 = vsel %vm466, %v619, 0
        %v711 = vsel %vm466, %v620, 0
        %v714 = vsel %vm466, %v621, 0
        %v717 = vsel %vm466, %v622, 0
        %v720 = vsel %vm473, %v545, 0
        %v723 = vsel %vm473, %v547, 0
        %725 = vmatprep.subr.mxu0 %v723
        %726 = vmatpush1.msra.mxu0 %v720
        %727 = vmatprep.subr.mxu0 0.0
        %728 = vmatpush1.msra.mxu0 0.0
        %729 = vmatprep.subr.mxu0 0.0
        %730 = vmatpush1.msra.mxu0 0.0
        %731 = vmatprep.subr.mxu0 0.0
        %732 = vmatpush1.msra.mxu0 0.0
        %733 = vmatprep.subr.mxu0 0.0
        %734 = vmatpush1.msra.mxu0 0.0
        %735 = vmatprep.subr.mxu0 0.0
        %736 = vmatpush1.msra.mxu0 0.0
        %737 = vmatprep.subr.mxu0 0.0
        %738 = vmatpush1.msra.mxu0 0.0
        %739 = vmatprep.subr.mxu0 0.0
        %740 = vmatpush1.msra.mxu0 0.0
        %741 = vmatprep.subr.mxu0 0.0
        %742 = vmatpush1.msra.mxu0 0.0
        %743 = vmatprep.subr.mxu0 0.0
        %744 = vmatpush1.msra.mxu0 0.0
        %745 = vmatprep.subr.mxu0 0.0
        %746 = vmatpush1.msra.mxu0 0.0
        %747 = vmatprep.subr.mxu0 0.0
        %748 = vmatpush1.msra.mxu0 0.0
        %749 = vmatprep.subr.mxu0 0.0
        %750 = vmatpush1.msra.mxu0 0.0
        %751 = vmatprep.subr.mxu0 0.0
        %752 = vmatpush1.msra.mxu0 0.0
        %753 = vmatprep.subr.mxu0 0.0
        %754 = vmatpush1.msra.mxu0 0.0
        %755 = vmatprep.subr.mxu0 0.0
        %756 = vmatpush1.msra.mxu0 0.0
        %757 = vmatprep.subr.mxu0 0.0
        %758 = vmatpush1.msra.mxu0 0.0
        %759 = vmatprep.subr.mxu0 0.0
        %760 = vmatpush1.msra.mxu0 0.0
        %761 = vmatprep.subr.mxu0 0.0
        %762 = vmatpush1.msra.mxu0 0.0
        %763 = vmatprep.subr.mxu0 0.0
        %764 = vmatpush1.msra.mxu0 0.0
        %765 = vmatprep.subr.mxu0 0.0
        %766 = vmatpush1.msra.mxu0 0.0
        %767 = vmatprep.subr.mxu0 0.0
        %768 = vmatpush1.msra.mxu0 0.0
        %769 = vmatprep.subr.mxu0 0.0
        %770 = vmatpush1.msra.mxu0 0.0
        %771 = vmatprep.subr.mxu0 0.0
        %772 = vmatpush1.msra.mxu0 0.0
        %773 = vmatprep.subr.mxu0 0.0
        %774 = vmatpush1.msra.mxu0 0.0
        %775 = vmatprep.subr.mxu0 0.0
        %776 = vmatpush1.msra.mxu0 0.0
        %777 = vmatprep.subr.mxu0 0.0
        %778 = vmatpush1.msra.mxu0 0.0
        %779 = vmatprep.subr.mxu0 0.0
        %780 = vmatpush1.msra.mxu0 0.0
        %781 = vmatprep.subr.mxu0 0.0
        %782 = vmatpush1.msra.mxu0 0.0
        %783 = vmatprep.subr.mxu0 0.0
        %784 = vmatpush1.msra.mxu0 0.0
        %785 = vmatprep.subr.mxu0 0.0
        %786 = vmatpush1.msra.mxu0 0.0
        %787 = vmatprep.subr.mxu0 0.0
        %788 = vmatpush1.msra.mxu0 0.0
        %789 = vmatprep.mubr.f32.mxu0 0.0
        %790 = vmatmul.mubr.f32.gmra.mrb[0].mxu0 %v624
        %v791 = vpop.f32.mrb[0].mxu0
        %v792 = vadd.f32 0.0, %v791
        %v793 = vpop.f32.mrb[0].mxu0
        %v794 = vadd.f32 0.0, %v793
        %795 = vmatprep.mubr.f32.mxu0 0.0
        %796 = vmatmul.mubr.f32.gmra.mrb[0].mxu0 %v627
        %v797 = vpop.f32.mrb[0].mxu0
        %v798 = vadd.f32 0.0, %v797
        %v799 = vpop.f32.mrb[0].mxu0
        %v800 = vadd.f32 0.0, %v799
        %801 = vmatprep.mubr.f32.mxu0 0.0
        %802 = vmatmul.mubr.f32.gmra.mrb[0].mxu0 %v630
        %v803 = vpop.f32.mrb[0].mxu0
        %v804 = vadd.f32 0.0, %v803
        %v805 = vpop.f32.mrb[0].mxu0
        %v806 = vadd.f32 0.0, %v805
        %807 = vmatprep.mubr.f32.mxu0 0.0
        %808 = vmatmul.mubr.f32.gmra.mrb[0].mxu0 %v633
        %v809 = vpop.f32.mrb[0].mxu0
        %v810 = vadd.f32 0.0, %v809
        %v811 = vpop.f32.mrb[0].mxu0
        %v812 = vadd.f32 0.0, %v811
        %813 = vmatprep.mubr.f32.mxu0 0.0
        %814 = vmatmul.mubr.f32.gmra.mrb[0].mxu0 %v636
        %v815 = vpop.f32.mrb[0].mxu0
        %v816 = vadd.f32 0.0, %v815
        %v817 = vpop.f32.mrb[0].mxu0
        %v818 = vadd.f32 0.0, %v817
        %819 = vmatprep.mubr.f32.mxu0 0.0
        %820 = vmatmul.mubr.f32.gmra.mrb[0].mxu0 %v639
        %v821 = vpop.f32.mrb[0].mxu0
        %v822 = vadd.f32 0.0, %v821
        %v823 = vpop.f32.mrb[0].mxu0
        %v824 = vadd.f32 0.0, %v823
        %825 = vmatprep.mubr.f32.mxu0 0.0
        %826 = vmatmul.mubr.f32.gmra.mrb[0].mxu0 %v642
        %v827 = vpop.f32.mrb[0].mxu0
        %v828 = vadd.f32 0.0, %v827
        %v829 = vpop.f32.mrb[0].mxu0
        %v830 = vadd.f32 0.0, %v829
        %831 = vmatprep.mubr.f32.mxu0 0.0
        %832 = vmatmul.mubr.f32.gmra.mrb[0].mxu0 %v645
        %v833 = vpop.f32.mrb[0].mxu0
        %v834 = vadd.f32 0.0, %v833
        %v835 = vpop.f32.mrb[0].mxu0
        %v836 = vadd.f32 0.0, %v835
        %837 = vmatprep.mubr.f32.mxu0 0.0
        %838 = vmatmul.mubr.f32.gmra.mrb[0].mxu0 %v648
        %v839 = vpop.f32.mrb[0].mxu0
        %v840 = vadd.f32 0.0, %v839
        %v841 = vpop.f32.mrb[0].mxu0
        %v842 = vadd.f32 0.0, %v841
        %843 = vmatprep.mubr.f32.mxu0 0.0
        %844 = vmatmul.mubr.f32.gmra.mrb[0].mxu0 %v651
        %v845 = vpop.f32.mrb[0].mxu0
        %v846 = vadd.f32 0.0, %v845
        %v847 = vpop.f32.mrb[0].mxu0
        %v848 = vadd.f32 0.0, %v847
        %849 = vmatprep.mubr.f32.mxu0 0.0
        %850 = vmatmul.mubr.f32.gmra.mrb[0].mxu0 %v654
        %v851 = vpop.f32.mrb[0].mxu0
        %v852 = vadd.f32 0.0, %v851
        %v853 = vpop.f32.mrb[0].mxu0
        %v854 = vadd.f32 0.0, %v853
        %855 = vmatprep.mubr.f32.mxu0 0.0
        %856 = vmatmul.mubr.f32.gmra.mrb[0].mxu0 %v657
        %v857 = vpop.f32.mrb[0].mxu0
        %v858 = vadd.f32 0.0, %v857
        %v859 = vpop.f32.mrb[0].mxu0
        %v860 = vadd.f32 0.0, %v859
        %861 = vmatprep.mubr.f32.mxu0 0.0
        %862 = vmatmul.mubr.f32.gmra.mrb[0].mxu0 %v660
        %v863 = vpop.f32.mrb[0].mxu0
        %v864 = vadd.f32 0.0, %v863
        %v865 = vpop.f32.mrb[0].mxu0
        %v866 = vadd.f32 0.0, %v865
        %867 = vmatprep.mubr.f32.mxu0 0.0
        %868 = vmatmul.mubr.f32.gmra.mrb[0].mxu0 %v663
        %v869 = vpop.f32.mrb[0].mxu0
        %v870 = vadd.f32 0.0, %v869
        %v871 = vpop.f32.mrb[0].mxu0
        %v872 = vadd.f32 0.0, %v871
        %873 = vmatprep.mubr.f32.mxu0 0.0
        %874 = vmatmul.mubr.f32.gmra.mrb[0].mxu0 %v666
        %v875 = vpop.f32.mrb[0].mxu0
        %v876 = vadd.f32 0.0, %v875
        %v877 = vpop.f32.mrb[0].mxu0
        %v878 = vadd.f32 0.0, %v877
        %879 = vmatprep.mubr.f32.mxu0 0.0
        %880 = vmatmul.mubr.f32.gmra.mrb[0].mxu0 %v669
        %v881 = vpop.f32.mrb[0].mxu0
        %v882 = vadd.f32 0.0, %v881
        %v883 = vpop.f32.mrb[0].mxu0
        %v884 = vadd.f32 0.0, %v883
        %885 = vmatprep.mubr.f32.mxu0 0.0
        %886 = vmatmul.mubr.f32.gmra.mrb[0].mxu0 %v672
        %v887 = vpop.f32.mrb[0].mxu0
        %v888 = vadd.f32 0.0, %v887
        %v889 = vpop.f32.mrb[0].mxu0
        %v890 = vadd.f32 0.0, %v889
        %891 = vmatprep.mubr.f32.mxu0 0.0
        %892 = vmatmul.mubr.f32.gmra.mrb[0].mxu0 %v675
        %v893 = vpop.f32.mrb[0].mxu0
        %v894 = vadd.f32 0.0, %v893
        %v895 = vpop.f32.mrb[0].mxu0
        %v896 = vadd.f32 0.0, %v895
        %897 = vmatprep.mubr.f32.mxu0 0.0
        %898 = vmatmul.mubr.f32.gmra.mrb[0].mxu0 %v678
        %v899 = vpop.f32.mrb[0].mxu0
        %v900 = vadd.f32 0.0, %v899
        %v901 = vpop.f32.mrb[0].mxu0
        %v902 = vadd.f32 0.0, %v901
        %903 = vmatprep.mubr.f32.mxu0 0.0
        %904 = vmatmul.mubr.f32.gmra.mrb[0].mxu0 %v681
        %v905 = vpop.f32.mrb[0].mxu0
        %v906 = vadd.f32 0.0, %v905
        %v907 = vpop.f32.mrb[0].mxu0
        %v908 = vadd.f32 0.0, %v907
        %909 = vmatprep.mubr.f32.mxu0 0.0
        %910 = vmatmul.mubr.f32.gmra.mrb[0].mxu0 %v684
        %v911 = vpop.f32.mrb[0].mxu0
        %v912 = vadd.f32 0.0, %v911
        %v913 = vpop.f32.mrb[0].mxu0
        %v914 = vadd.f32 0.0, %v913
        %915 = vmatprep.mubr.f32.mxu0 0.0
        %916 = vmatmul.mubr.f32.gmra.mrb[0].mxu0 %v687
        %v917 = vpop.f32.mrb[0].mxu0
        %v918 = vadd.f32 0.0, %v917
        %v919 = vpop.f32.mrb[0].mxu0
        %v920 = vadd.f32 0.0, %v919
        %921 = vmatprep.mubr.f32.mxu0 0.0
        %922 = vmatmul.mubr.f32.gmra.mrb[0].mxu0 %v690
        %v923 = vpop.f32.mrb[0].mxu0
        %v924 = vadd.f32 0.0, %v923
        %v925 = vpop.f32.mrb[0].mxu0
        %v926 = vadd.f32 0.0, %v925
        %927 = vmatprep.mubr.f32.mxu0 0.0
        %928 = vmatmul.mubr.f32.gmra.mrb[0].mxu0 %v693
        %v929 = vpop.f32.mrb[0].mxu0
        %v930 = vadd.f32 0.0, %v929
        %v931 = vpop.f32.mrb[0].mxu0
        %v932 = vadd.f32 0.0, %v931
        %933 = vmatprep.mubr.f32.mxu0 0.0
        %934 = vmatmul.mubr.f32.gmra.mrb[0].mxu0 %v696
        %v935 = vpop.f32.mrb[0].mxu0
        %v936 = vadd.f32 0.0, %v935
        %v937 = vpop.f32.mrb[0].mxu0
        %v938 = vadd.f32 0.0, %v937
        %939 = vmatprep.mubr.f32.mxu0 0.0
        %940 = vmatmul.mubr.f32.gmra.mrb[0].mxu0 %v699
        %v941 = vpop.f32.mrb[0].mxu0
        %v942 = vadd.f32 0.0, %v941
        %v943 = vpop.f32.mrb[0].mxu0
        %v944 = vadd.f32 0.0, %v943
        %945 = vmatprep.mubr.f32.mxu0 0.0
        %946 = vmatmul.mubr.f32.gmra.mrb[0].mxu0 %v702
        %v947 = vpop.f32.mrb[0].mxu0
        %v948 = vadd.f32 0.0, %v947
        %v949 = vpop.f32.mrb[0].mxu0
        %v950 = vadd.f32 0.0, %v949
        %951 = vmatprep.mubr.f32.mxu0 0.0
        %952 = vmatmul.mubr.f32.gmra.mrb[0].mxu0 %v705
        %v953 = vpop.f32.mrb[0].mxu0
        %v954 = vadd.f32 0.0, %v953
        %v955 = vpop.f32.mrb[0].mxu0
        %v956 = vadd.f32 0.0, %v955
        %957 = vmatprep.mubr.f32.mxu0 0.0
        %958 = vmatmul.mubr.f32.gmra.mrb[0].mxu0 %v708
        %v959 = vpop.f32.mrb[0].mxu0
        %v960 = vadd.f32 0.0, %v959
        %v961 = vpop.f32.mrb[0].mxu0
        %v962 = vadd.f32 0.0, %v961
        %963 = vmatprep.mubr.f32.mxu0 0.0
        %964 = vmatmul.mubr.f32.gmra.mrb[0].mxu0 %v711
        %v965 = vpop.f32.mrb[0].mxu0
        %v966 = vadd.f32 0.0, %v965
        %v967 = vpop.f32.mrb[0].mxu0
        %v968 = vadd.f32 0.0, %v967
        %969 = vmatprep.mubr.f32.mxu0 0.0
        %970 = vmatmul.mubr.f32.gmra.mrb[0].mxu0 %v714
        %v971 = vpop.f32.mrb[0].mxu0
        %v972 = vadd.f32 0.0, %v971
        %v973 = vpop.f32.mrb[0].mxu0
        %v974 = vadd.f32 0.0, %v973
        %975 = vmatprep.mubr.f32.mxu0 0.0
        %976 = vmatmul.mubr.f32.gmra.mrb[0].mxu0 %v717
        %v977 = vpop.f32.mrb[0].mxu0
        %v978 = vadd.f32 0.0, %v977
        %v979 = vpop.f32.mrb[0].mxu0
        %v980 = vadd.f32 0.0, %v979
        %981 = vdwg.mxu0
        %v982 = vmax.f32 %v792, %v804
        %v983 = vmax.f32 %v798, %v810
        %v984 = vmax.f32 %v982, %v816
        %v985 = vmax.f32 %v983, %v822
        %v986 = vmax.f32 %v984, %v828
        %v987 = vmax.f32 %v985, %v834
        %v988 = vmax.f32 %v986, %v840
        %v989 = vmax.f32 %v987, %v846
        %v990 = vmax.f32 %v988, %v852
        %v991 = vmax.f32 %v989, %v858
        %v992 = vmax.f32 %v990, %v864
        %v993 = vmax.f32 %v991, %v870
        %v994 = vmax.f32 %v992, %v876
        %v995 = vmax.f32 %v993, %v882
        %v996 = vmax.f32 %v994, %v888
        %v997 = vmax.f32 %v995, %v894
        %v998 = vmax.f32 %v996, %v900
        %v999 = vmax.f32 %v997, %v906
        %v1000 = vmax.f32 %v998, %v912
        %v1001 = vmax.f32 %v999, %v918
        %v1002 = vmax.f32 %v1000, %v924
        %v1003 = vmax.f32 %v1001, %v930
        %v1004 = vmax.f32 %v1002, %v936
        %v1005 = vmax.f32 %v1003, %v942
        %v1006 = vmax.f32 %v1004, %v948
        %v1007 = vmax.f32 %v1005, %v954
        %v1008 = vmax.f32 %v1006, %v960
        %v1009 = vmax.f32 %v1007, %v966
        %v1010 = vmax.f32 %v1008, %v972
        %v1011 = vmax.f32 %v1009, %v978
        %v1012 = vmax.f32 %v1010, %v1011
        %v1013 = vrot.slane %v1012, 4
        %v1014 = vmax.f32 %v1012, %v1013
        %v1015 = vrot.slane %v1014, 2
        %v1016 = vmax.f32 %v1014, %v1015
        %v1017 = vrot.slane %v1016, 1
        %v1018 = vmax.f32 %v1016, %v1017
        %v1019 = vmax.f32 %v794, %v806
        %v1020 = vmax.f32 %v800, %v812
        %v1021 = vmax.f32 %v1019, %v818
        %v1022 = vmax.f32 %v1020, %v824
        %v1023 = vmax.f32 %v1021, %v830
        %v1024 = vmax.f32 %v1022, %v836
        %v1025 = vmax.f32 %v1023, %v842
        %v1026 = vmax.f32 %v1024, %v848
        %v1027 = vmax.f32 %v1025, %v854
        %v1028 = vmax.f32 %v1026, %v860
        %v1029 = vmax.f32 %v1027, %v866
        %v1030 = vmax.f32 %v1028, %v872
        %v1031 = vmax.f32 %v1029, %v878
        %v1032 = vmax.f32 %v1030, %v884
        %v1033 = vmax.f32 %v1031, %v890
        %v1034 = vmax.f32 %v1032, %v896
        %v1035 = vmax.f32 %v1033, %v902
        %v1036 = vmax.f32 %v1034, %v908
        %v1037 = vmax.f32 %v1035, %v914
        %v1038 = vmax.f32 %v1036, %v920
        %v1039 = vmax.f32 %v1037, %v926
        %v1040 = vmax.f32 %v1038, %v932
        %v1041 = vmax.f32 %v1039, %v938
        %v1042 = vmax.f32 %v1040, %v944
        %v1043 = vmax.f32 %v1041, %v950
        %v1044 = vmax.f32 %v1042, %v956
        %v1045 = vmax.f32 %v1043, %v962
        %v1046 = vmax.f32 %v1044, %v968
        %v1047 = vmax.f32 %v1045, %v974
        %v1048 = vmax.f32 %v1046, %v980
        %v1049 = vmax.f32 %v1047, %v1048
        %v1050 = vrot.slane %v1049, 4
        %v1051 = vmax.f32 %v1049, %v1050
        %v1052 = vrot.slane %v1051, 2
        %v1053 = vmax.f32 %v1051, %v1052
        %v1054 = vrot.slane %v1053, 1
        %v1055 = vmax.f32 %v1053, %v1054
        %v1056 = vsub.f32 %v792, %v1018
        %v1057 = vsub.f32 %v794, %v1055
        %v1058 = vsub.f32 %v798, %v1018
        %v1059 = vsub.f32 %v800, %v1055
        %v1060 = vsub.f32 %v804, %v1018
        %v1061 = vsub.f32 %v806, %v1055
        %v1062 = vsub.f32 %v810, %v1018
        %v1063 = vsub.f32 %v812, %v1055
        %v1064 = vsub.f32 %v816, %v1018
        %v1065 = vsub.f32 %v818, %v1055
        %v1066 = vsub.f32 %v822, %v1018
        %v1067 = vsub.f32 %v824, %v1055
        %v1068 = vsub.f32 %v828, %v1018
        %v1069 = vsub.f32 %v830, %v1055
        %v1070 = vsub.f32 %v834, %v1018
        %v1071 = vsub.f32 %v836, %v1055
        %v1072 = vsub.f32 %v840, %v1018
        %v1073 = vsub.f32 %v842, %v1055
        %v1074 = vsub.f32 %v846, %v1018
        %v1075 = vsub.f32 %v848, %v1055
        %v1076 = vsub.f32 %v852, %v1018
        %v1077 = vsub.f32 %v854, %v1055
        %v1078 = vsub.f32 %v858, %v1018
        %v1079 = vsub.f32 %v860, %v1055
        %v1080 = vsub.f32 %v864, %v1018
        %v1081 = vsub.f32 %v866, %v1055
        %v1082 = vsub.f32 %v870, %v1018
        %v1083 = vsub.f32 %v872, %v1055
        %v1084 = vsub.f32 %v876, %v1018
        %v1085 = vsub.f32 %v878, %v1055
        %v1086 = vsub.f32 %v882, %v1018
        %v1087 = vsub.f32 %v884, %v1055
        %v1088 = vsub.f32 %v888, %v1018
        %v1089 = vsub.f32 %v890, %v1055
        %v1090 = vsub.f32 %v894, %v1018
        %v1091 = vsub.f32 %v896, %v1055
        %v1092 = vsub.f32 %v900, %v1018
        %v1093 = vsub.f32 %v902, %v1055
        %v1094 = vsub.f32 %v906, %v1018
        %v1095 = vsub.f32 %v908, %v1055
        %v1096 = vsub.f32 %v912, %v1018
        %v1097 = vsub.f32 %v914, %v1055
        %v1098 = vsub.f32 %v918, %v1018
        %v1099 = vsub.f32 %v920, %v1055
        %v1100 = vsub.f32 %v924, %v1018
        %v1101 = vsub.f32 %v926, %v1055
        %v1102 = vsub.f32 %v930, %v1018
        %v1103 = vsub.f32 %v932, %v1055
        %v1104 = vsub.f32 %v936, %v1018
        %v1105 = vsub.f32 %v938, %v1055
        %v1106 = vsub.f32 %v942, %v1018
        %v1107 = vsub.f32 %v944, %v1055
        %v1108 = vsub.f32 %v948, %v1018
        %v1109 = vsub.f32 %v950, %v1055
        %v1110 = vsub.f32 %v954, %v1018
        %v1111 = vsub.f32 %v956, %v1055
        %v1112 = vsub.f32 %v960, %v1018
        %v1113 = vsub.f32 %v962, %v1055
        %v1114 = vsub.f32 %v966, %v1018
        %v1115 = vsub.f32 %v968, %v1055
        %v1116 = vsub.f32 %v972, %v1018
        %v1117 = vsub.f32 %v974, %v1055
        %v1118 = vsub.f32 %v978, %v1018
        %v1119 = vsub.f32 %v980, %v1055
        %v1120 = vmul.f32 %v1056, 1.442695
        %v1121 = vpow.pop %v1120
        %v1122 = vmul.f32 %v1057, 1.442695
        %v1123 = vpow.pop %v1122
        %v1124 = vmul.f32 %v1058, 1.442695
        %v1125 = vpow.pop %v1124
        %v1126 = vmul.f32 %v1059, 1.442695
        %v1127 = vpow.pop %v1126
        %v1128 = vmul.f32 %v1060, 1.442695
        %v1129 = vpow.pop %v1128
        %v1130 = vmul.f32 %v1061, 1.442695
        %v1131 = vpow.pop %v1130
        %v1132 = vmul.f32 %v1062, 1.442695
        %v1133 = vpow.pop %v1132
        %v1134 = vmul.f32 %v1063, 1.442695
        %v1135 = vpow.pop %v1134
        %v1136 = vmul.f32 %v1064, 1.442695
        %v1137 = vpow.pop %v1136
        %v1138 = vmul.f32 %v1065, 1.442695
        %v1139 = vpow.pop %v1138
        %v1140 = vmul.f32 %v1066, 1.442695
        %v1141 = vpow.pop %v1140
        %v1142 = vmul.f32 %v1067, 1.442695
        %v1143 = vpow.pop %v1142
        %v1144 = vmul.f32 %v1068, 1.442695
        %v1145 = vpow.pop %v1144
        %v1146 = vmul.f32 %v1069, 1.442695
        %v1147 = vpow.pop %v1146
        %v1148 = vmul.f32 %v1070, 1.442695
        %v1149 = vpow.pop %v1148
        %v1150 = vmul.f32 %v1071, 1.442695
        %v1151 = vpow.pop %v1150
        %v1152 = vmul.f32 %v1072, 1.442695
        %v1153 = vpow.pop %v1152
        %v1154 = vmul.f32 %v1073, 1.442695
        %v1155 = vpow.pop %v1154
        %v1156 = vmul.f32 %v1074, 1.442695
        %v1157 = vpow.pop %v1156
        %v1158 = vmul.f32 %v1075, 1.442695
        %v1159 = vpow.pop %v1158
        %v1160 = vmul.f32 %v1076, 1.442695
        %v1161 = vpow.pop %v1160
        %v1162 = vmul.f32 %v1077, 1.442695
        %v1163 = vpow.pop %v1162
        %v1164 = vmul.f32 %v1078, 1.442695
        %v1165 = vpow.pop %v1164
        %v1166 = vmul.f32 %v1079, 1.442695
        %v1167 = vpow.pop %v1166
        %v1168 = vmul.f32 %v1080, 1.442695
        %v1169 = vpow.pop %v1168
        %v1170 = vmul.f32 %v1081, 1.442695
        %v1171 = vpow.pop %v1170
        %v1172 = vmul.f32 %v1082, 1.442695
        %v1173 = vpow.pop %v1172
        %v1174 = vmul.f32 %v1083, 1.442695
        %v1175 = vpow.pop %v1174
        %v1176 = vmul.f32 %v1084, 1.442695
        %v1177 = vpow.pop %v1176
        %v1178 = vmul.f32 %v1085, 1.442695
        %v1179 = vpow.pop %v1178
        %v1180 = vmul.f32 %v1086, 1.442695
        %v1181 = vpow.pop %v1180
        %v1182 = vmul.f32 %v1087, 1.442695
        %v1183 = vpow.pop %v1182
        %v1184 = vmul.f32 %v1088, 1.442695
        %v1185 = vpow.pop %v1184
        %v1186 = vmul.f32 %v1089, 1.442695
        %v1187 = vpow.pop %v1186
        %v1188 = vmul.f32 %v1090, 1.442695
        %v1189 = vpow.pop %v1188
        %v1190 = vmul.f32 %v1091, 1.442695
        %v1191 = vpow.pop %v1190
        %v1192 = vmul.f32 %v1092, 1.442695
        %v1193 = vpow.pop %v1192
        %v1194 = vmul.f32 %v1093, 1.442695
        %v1195 = vpow.pop %v1194
        %v1196 = vmul.f32 %v1094, 1.442695
        %v1197 = vpow.pop %v1196
        %v1198 = vmul.f32 %v1095, 1.442695
        %v1199 = vpow.pop %v1198
        %v1200 = vmul.f32 %v1096, 1.442695
        %v1201 = vpow.pop %v1200
        %v1202 = vmul.f32 %v1097, 1.442695
        %v1203 = vpow.pop %v1202
        %v1204 = vmul.f32 %v1098, 1.442695
        %v1205 = vpow.pop %v1204
        %v1206 = vmul.f32 %v1099, 1.442695
        %v1207 = vpow.pop %v1206
        %v1208 = vmul.f32 %v1100, 1.442695
        %v1209 = vpow.pop %v1208
        %v1210 = vmul.f32 %v1101, 1.442695
        %v1211 = vpow.pop %v1210
        %v1212 = vmul.f32 %v1102, 1.442695
        %v1213 = vpow.pop %v1212
        %v1214 = vmul.f32 %v1103, 1.442695
        %v1215 = vpow.pop %v1214
        %v1216 = vmul.f32 %v1104, 1.442695
        %v1217 = vpow.pop %v1216
        %v1218 = vmul.f32 %v1105, 1.442695
        %v1219 = vpow.pop %v1218
        %v1220 = vmul.f32 %v1106, 1.442695
        %v1221 = vpow.pop %v1220
        %v1222 = vmul.f32 %v1107, 1.442695
        %v1223 = vpow.pop %v1222
        %v1224 = vmul.f32 %v1108, 1.442695
        %v1225 = vpow.pop %v1224
        %v1226 = vmul.f32 %v1109, 1.442695
        %v1227 = vpow.pop %v1226
        %v1228 = vmul.f32 %v1110, 1.442695
        %v1229 = vpow.pop %v1228
        %v1230 = vmul.f32 %v1111, 1.442695
        %v1231 = vpow.pop %v1230
        %v1232 = vmul.f32 %v1112, 1.442695
        %v1233 = vpow.pop %v1232
        %v1234 = vmul.f32 %v1113, 1.442695
        %v1235 = vpow.pop %v1234
        %v1236 = vmul.f32 %v1114, 1.442695
        %v1237 = vpow.pop %v1236
        %v1238 = vmul.f32 %v1115, 1.442695
        %v1239 = vpow.pop %v1238
        %v1240 = vmul.f32 %v1116, 1.442695
        %v1241 = vpow.pop %v1240
        %v1242 = vmul.f32 %v1117, 1.442695
        %v1243 = vpow.pop %v1242
        %v1244 = vmul.f32 %v1118, 1.442695
        %v1245 = vpow.pop %v1244
        %v1246 = vmul.f32 %v1119, 1.442695
        %v1247 = vpow.pop %v1246
        %v1248 = vadd.f32 %v1121, %v1125
        %v1249 = vadd.f32 %v1248, %v1129
        %v1250 = vadd.f32 %v1249, %v1133
        %v1251 = vadd.f32 %v1250, %v1137
        %v1252 = vadd.f32 %v1251, %v1141
        %v1253 = vadd.f32 %v1252, %v1145
        %v1254 = vadd.f32 %v1253, %v1149
        %v1255 = vadd.f32 %v1254, %v1153
        %v1256 = vadd.f32 %v1255, %v1157
        %v1257 = vadd.f32 %v1256, %v1161
        %v1258 = vadd.f32 %v1257, %v1165
        %v1259 = vadd.f32 %v1258, %v1169
        %v1260 = vadd.f32 %v1259, %v1173
        %v1261 = vadd.f32 %v1260, %v1177
        %v1262 = vadd.f32 %v1261, %v1181
        %v1263 = vadd.f32 %v1262, %v1185
        %v1264 = vadd.f32 %v1263, %v1189
        %v1265 = vadd.f32 %v1264, %v1193
        %v1266 = vadd.f32 %v1265, %v1197
        %v1267 = vadd.f32 %v1266, %v1201
        %v1268 = vadd.f32 %v1267, %v1205
        %v1269 = vadd.f32 %v1268, %v1209
        %v1270 = vadd.f32 %v1269, %v1213
        %v1271 = vadd.f32 %v1270, %v1217
        %v1272 = vadd.f32 %v1271, %v1221
        %v1273 = vadd.f32 %v1272, %v1225
        %v1274 = vadd.f32 %v1273, %v1229
        %v1275 = vadd.f32 %v1274, %v1233
        %v1276 = vadd.f32 %v1275, %v1237
        %v1277 = vadd.f32 %v1276, %v1241
        %v1278 = vadd.f32 %v1277, %v1245
        %v1279 = vrot.slane %v1278, 4
        %v1280 = vadd.f32 %v1278, %v1279
        %v1281 = vrot.slane %v1280, 2
        %v1282 = vadd.f32 %v1280, %v1281
        %v1283 = vrot.slane %v1282, 1
        %v1284 = vadd.f32 %v1282, %v1283
        %v1285 = vadd.f32 %v1123, %v1127
        %v1286 = vadd.f32 %v1285, %v1131
        %v1287 = vadd.f32 %v1286, %v1135
        %v1288 = vadd.f32 %v1287, %v1139
        %v1289 = vadd.f32 %v1288, %v1143
        %v1290 = vadd.f32 %v1289, %v1147
        %v1291 = vadd.f32 %v1290, %v1151
        %v1292 = vadd.f32 %v1291, %v1155
        %v1293 = vadd.f32 %v1292, %v1159
        %v1294 = vadd.f32 %v1293, %v1163
        %v1295 = vadd.f32 %v1294, %v1167
        %v1296 = vadd.f32 %v1295, %v1171
        %v1297 = vadd.f32 %v1296, %v1175
        %v1298 = vadd.f32 %v1297, %v1179
        %v1299 = vadd.f32 %v1298, %v1183
        %v1300 = vadd.f32 %v1299, %v1187
        %v1301 = vadd.f32 %v1300, %v1191
        %v1302 = vadd.f32 %v1301, %v1195
        %v1303 = vadd.f32 %v1302, %v1199
        %v1304 = vadd.f32 %v1303, %v1203
        %v1305 = vadd.f32 %v1304, %v1207
        %v1306 = vadd.f32 %v1305, %v1211
        %v1307 = vadd.f32 %v1306, %v1215
        %v1308 = vadd.f32 %v1307, %v1219
        %v1309 = vadd.f32 %v1308, %v1223
        %v1310 = vadd.f32 %v1309, %v1227
        %v1311 = vadd.f32 %v1310, %v1231
        %v1312 = vadd.f32 %v1311, %v1235
        %v1313 = vadd.f32 %v1312, %v1239
        %v1314 = vadd.f32 %v1313, %v1243
        %v1315 = vadd.f32 %v1314, %v1247
        %v1316 = vrot.slane %v1315, 4
        %v1317 = vadd.f32 %v1315, %v1316
        %v1318 = vrot.slane %v1317, 2
        %v1319 = vadd.f32 %v1317, %v1318
        %v1320 = vrot.slane %v1319, 1
        %v1321 = vadd.f32 %v1319, %v1320
        %v1322 = vrcp.pop %v1284
        %v1323 = vrcp.pop %v1321
        %v1324 = vmul.f32 %v551, %v1322
        %v1325 = vmul.f32 %v553, %v1323
        %1326 = vmatprep.subr.mxu0 %v1123
        %1327 = vmatpush1.xpose.msra.mxu0 %v1121
        %1328 = vmatprep.subr.mxu0 %v1127
        %1329 = vmatpush1.xpose.msra.mxu0 %v1125
        %1330 = vmatprep.subr.mxu0 %v1131
        %1331 = vmatpush1.xpose.msra.mxu0 %v1129
        %1332 = vmatprep.subr.mxu0 %v1135
        %1333 = vmatpush1.xpose.msra.mxu0 %v1133
        %1334 = vmatprep.subr.mxu0 %v1139
        %1335 = vmatpush1.xpose.msra.mxu0 %v1137
        %1336 = vmatprep.subr.mxu0 %v1143
        %1337 = vmatpush1.xpose.msra.mxu0 %v1141
        %1338 = vmatprep.subr.mxu0 %v1147
        %1339 = vmatpush1.xpose.msra.mxu0 %v1145
        %1340 = vmatprep.subr.mxu0 %v1151
        %1341 = vmatpush1.xpose.msra.mxu0 %v1149
        %1342 = vmatprep.subr.mxu0 %v1155
        %1343 = vmatpush1.xpose.msra.mxu0 %v1153
        %1344 = vmatprep.subr.mxu0 %v1159
        %1345 = vmatpush1.xpose.msra.mxu0 %v1157
        %1346 = vmatprep.subr.mxu0 %v1163
        %1347 = vmatpush1.xpose.msra.mxu0 %v1161
        %1348 = vmatprep.subr.mxu0 %v1167
        %1349 = vmatpush1.xpose.msra.mxu0 %v1165
        %1350 = vmatprep.subr.mxu0 %v1171
        %1351 = vmatpush1.xpose.msra.mxu0 %v1169
        %1352 = vmatprep.subr.mxu0 %v1175
        %1353 = vmatpush1.xpose.msra.mxu0 %v1173
        %1354 = vmatprep.subr.mxu0 %v1179
        %1355 = vmatpush1.xpose.msra.mxu0 %v1177
        %1356 = vmatprep.subr.mxu0 %v1183
        %1357 = vmatpush1.xpose.msra.mxu0 %v1181
        %1358 = vmatprep.subr.mxu0 %v1187
        %1359 = vmatpush1.xpose.msra.mxu0 %v1185
        %1360 = vmatprep.subr.mxu0 %v1191
        %1361 = vmatpush1.xpose.msra.mxu0 %v1189
        %1362 = vmatprep.subr.mxu0 %v1195
        %1363 = vmatpush1.xpose.msra.mxu0 %v1193
        %1364 = vmatprep.subr.mxu0 %v1199
        %1365 = vmatpush1.xpose.msra.mxu0 %v1197
        %1366 = vmatprep.subr.mxu0 %v1203
        %1367 = vmatpush1.xpose.msra.mxu0 %v1201
        %1368 = vmatprep.subr.mxu0 %v1207
        %1369 = vmatpush1.xpose.msra.mxu0 %v1205
        %1370 = vmatprep.subr.mxu0 %v1211
        %1371 = vmatpush1.xpose.msra.mxu0 %v1209
        %1372 = vmatprep.subr.mxu0 %v1215
        %1373 = vmatpush1.xpose.msra.mxu0 %v1213
        %1374 = vmatprep.subr.mxu0 %v1219
        %1375 = vmatpush1.xpose.msra.mxu0 %v1217
        %1376 = vmatprep.subr.mxu0 %v1223
        %1377 = vmatpush1.xpose.msra.mxu0 %v1221
        %1378 = vmatprep.subr.mxu0 %v1227
        %1379 = vmatpush1.xpose.msra.mxu0 %v1225
        %1380 = vmatprep.subr.mxu0 %v1231
        %1381 = vmatpush1.xpose.msra.mxu0 %v1229
        %1382 = vmatprep.subr.mxu0 %v1235
        %1383 = vmatpush1.xpose.msra.mxu0 %v1233
        %1384 = vmatprep.subr.mxu0 %v1239
        %1385 = vmatpush1.xpose.msra.mxu0 %v1237
        %1386 = vmatprep.subr.mxu0 %v1243
        %1387 = vmatpush1.xpose.msra.mxu0 %v1241
        %1388 = vmatprep.subr.mxu0 %v1247
        %1389 = vmatpush1.xpose.msra.mxu0 %v1245
        %1390 = vmatprep.mubr.f32.mxu0 %v1325
        %1391 = vmatmul.mubr.f32.gmra.mrb[0].mxu0 %v1324
        %v1392 = vpop.f32.mrb[0].mxu0
        %v1393 = vadd.f32 0.0, %v1392
        %v1394 = vpop.f32.mrb[0].mxu0
        %v1395 = vadd.f32 0.0, %v1394
        %1396 = vdwg.mxu0
        %v1397 = vld [vmem:[#allocation4] sm:$0xff]
        %v1400 = vcombine.low %v1393, %v1395
        %v1402 = vadd.f32 %v1397, %v1400
        %1403 = vst [vmem:[#allocation4] sm:$0xff] %v1402
        %s1404 = scalar_lea.vmem [#allocation3], 8
        %v1405 = vld [vmem:[%s1404] sm:$0xff]
        %v1407 = vcombine.high %v1405, %v1405
        %1409 = vxpose.xlu0.b32.start [1/16] %v1405, 128
        %1410 = vxpose.xlu0.b32.cont [2/16] 0.0, 128
        %1411 = vxpose.xlu0.b32.cont [3/16] 0.0, 128
        %1412 = vxpose.xlu0.b32.cont [4/16] 0.0, 128
        %1413 = vxpose.xlu0.b32.cont [5/16] 0.0, 128
        %1414 = vxpose.xlu0.b32.cont [6/16] 0.0, 128
        %1415 = vxpose.xlu0.b32.cont [7/16] 0.0, 128
        %1416 = vxpose.xlu0.b32.cont [8/16] 0.0, 128
        %1417 = vxpose.xlu0.b32.cont [9/16] 0.0, 128
        %1418 = vxpose.xlu0.b32.cont [10/16] 0.0, 128
        %1419 = vxpose.xlu0.b32.cont [11/16] 0.0, 128
        %1420 = vxpose.xlu0.b32.cont [12/16] 0.0, 128
        %1421 = vxpose.xlu0.b32.cont [13/16] 0.0, 128
        %1422 = vxpose.xlu0.b32.cont [14/16] 0.0, 128
        %1423 = vxpose.xlu0.b32.cont [15/16] 0.0, 128
        %1424 = vxpose.xlu0.b32.end [16/16] 0.0, 128
        %v1425 = vpop.trf.xlu0
        %v1426 = vpop.trf.xlu0
        %v1427 = vpop.trf.xlu0
        %v1428 = vpop.trf.xlu0
        %v1429 = vpop.trf.xlu0
        %v1430 = vpop.trf.xlu0
        %v1431 = vpop.trf.xlu0
        %v1432 = vpop.trf.xlu0
        %v1433 = vpop.trf.xlu0
        %v1434 = vpop.trf.xlu0
        %v1435 = vpop.trf.xlu0
        %v1436 = vpop.trf.xlu0
        %v1437 = vpop.trf.xlu0
        %v1438 = vpop.trf.xlu0
        %v1439 = vpop.trf.xlu0
        %v1440 = vpop.trf.xlu0
        %1441 = vxpose.xlu0.b32.start [1/16] %v1407, 128
        %1442 = vxpose.xlu0.b32.cont [2/16] 0.0, 128
        %1443 = vxpose.xlu0.b32.cont [3/16] 0.0, 128
        %1444 = vxpose.xlu0.b32.cont [4/16] 0.0, 128
        %1445 = vxpose.xlu0.b32.cont [5/16] 0.0, 128
        %1446 = vxpose.xlu0.b32.cont [6/16] 0.0, 128
        %1447 = vxpose.xlu0.b32.cont [7/16] 0.0, 128
        %1448 = vxpose.xlu0.b32.cont [8/16] 0.0, 128
        %1449 = vxpose.xlu0.b32.cont [9/16] 0.0, 128
        %1450 = vxpose.xlu0.b32.cont [10/16] 0.0, 128
        %1451 = vxpose.xlu0.b32.cont [11/16] 0.0, 128
        %1452 = vxpose.xlu0.b32.cont [12/16] 0.0, 128
        %1453 = vxpose.xlu0.b32.cont [13/16] 0.0, 128
        %1454 = vxpose.xlu0.b32.cont [14/16] 0.0, 128
        %1455 = vxpose.xlu0.b32.cont [15/16] 0.0, 128
        %1456 = vxpose.xlu0.b32.end [16/16] 0.0, 128
        %v1457 = vpop.trf.xlu0
        %v1458 = vpop.trf.xlu0
        %v1459 = vpop.trf.xlu0
        %v1460 = vpop.trf.xlu0
        %v1461 = vpop.trf.xlu0
        %v1462 = vpop.trf.xlu0
        %v1463 = vpop.trf.xlu0
        %v1464 = vpop.trf.xlu0
        %v1465 = vpop.trf.xlu0
        %v1466 = vpop.trf.xlu0
        %v1467 = vpop.trf.xlu0
        %v1468 = vpop.trf.xlu0
        %v1469 = vpop.trf.xlu0
        %v1470 = vpop.trf.xlu0
        %v1471 = vpop.trf.xlu0
        %v1472 = vpop.trf.xlu0
        %v1473 = vrot.slane %v545, 4
        %v1474 = vrot.slane %v547, 4
        %v1476 = vsel %vm466, %v1425, 0
        %v1479 = vsel %vm466, %v1426, 0
        %v1482 = vsel %vm466, %v1427, 0
        %v1485 = vsel %vm466, %v1428, 0
        %v1488 = vsel %vm466, %v1429, 0
        %v1491 = vsel %vm466, %v1430, 0
        %v1494 = vsel %vm466, %v1431, 0
        %v1497 = vsel %vm466, %v1432, 0
        %v1500 = vsel %vm466, %v1433, 0
        %v1503 = vsel %vm466, %v1434, 0
        %v1506 = vsel %vm466, %v1435, 0
        %v1509 = vsel %vm466, %v1436, 0
        %v1512 = vsel %vm466, %v1437, 0
        %v1515 = vsel %vm466, %v1438, 0
        %v1518 = vsel %vm466, %v1439, 0
        %v1521 = vsel %vm466, %v1440, 0
        %v1524 = vsel %vm466, %v1457, 0
        %v1527 = vsel %vm466, %v1458, 0
        %v1530 = vsel %vm466, %v1459, 0
        %v1533 = vsel %vm466, %v1460, 0
        %v1536 = vsel %vm466, %v1461, 0
        %v1539 = vsel %vm466, %v1462, 0
        %v1542 = vsel %vm466, %v1463, 0
        %v1545 = vsel %vm466, %v1464, 0
        %v1548 = vsel %vm466, %v1465, 0
        %v1551 = vsel %vm466, %v1466, 0
        %v1554 = vsel %vm466, %v1467, 0
        %v1557 = vsel %vm466, %v1468, 0
        %v1560 = vsel %vm466, %v1469, 0
        %v1563 = vsel %vm466, %v1470, 0
        %v1566 = vsel %vm466, %v1471, 0
        %v1569 = vsel %vm466, %v1472, 0
        %v1571 = vsel %vm473, %v1473, 0
        %v1573 = vsel %vm473, %v1474, 0
        %1575 = vmatprep.subr.mxu0 %v1573
        %1576 = vmatpush1.msra.mxu0 %v1571
        %1577 = vmatprep.subr.mxu0 0.0
        %1578 = vmatpush1.msra.mxu0 0.0
        %1579 = vmatprep.subr.mxu0 0.0
        %1580 = vmatpush1.msra.mxu0 0.0
        %1581 = vmatprep.subr.mxu0 0.0
        %1582 = vmatpush1.msra.mxu0 0.0
        %1583 = vmatprep.subr.mxu0 0.0
        %1584 = vmatpush1.msra.mxu0 0.0
        %1585 = vmatprep.subr.mxu0 0.0
        %1586 = vmatpush1.msra.mxu0 0.0
        %1587 = vmatprep.subr.mxu0 0.0
        %1588 = vmatpush1.msra.mxu0 0.0
        %1589 = vmatprep.subr.mxu0 0.0
        %1590 = vmatpush1.msra.mxu0 0.0
        %1591 = vmatprep.subr.mxu0 0.0
        %1592 = vmatpush1.msra.mxu0 0.0
        %1593 = vmatprep.subr.mxu0 0.0
        %1594 = vmatpush1.msra.mxu0 0.0
        %1595 = vmatprep.subr.mxu0 0.0
        %1596 = vmatpush1.msra.mxu0 0.0
        %1597 = vmatprep.subr.mxu0 0.0
        %1598 = vmatpush1.msra.mxu0 0.0
        %1599 = vmatprep.subr.mxu0 0.0
        %1600 = vmatpush1.msra.mxu0 0.0
        %1601 = vmatprep.subr.mxu0 0.0
        %1602 = vmatpush1.msra.mxu0 0.0
        %1603 = vmatprep.subr.mxu0 0.0
        %1604 = vmatpush1.msra.mxu0 0.0
        %1605 = vmatprep.subr.mxu0 0.0
        %1606 = vmatpush1.msra.mxu0 0.0
        %1607 = vmatprep.subr.mxu0 0.0
        %1608 = vmatpush1.msra.mxu0 0.0
        %1609 = vmatprep.subr.mxu0 0.0
        %1610 = vmatpush1.msra.mxu0 0.0
        %1611 = vmatprep.subr.mxu0 0.0
        %1612 = vmatpush1.msra.mxu0 0.0
        %1613 = vmatprep.subr.mxu0 0.0
        %1614 = vmatpush1.msra.mxu0 0.0
        %1615 = vmatprep.subr.mxu0 0.0
        %1616 = vmatpush1.msra.mxu0 0.0
        %1617 = vmatprep.subr.mxu0 0.0
        %1618 = vmatpush1.msra.mxu0 0.0
        %1619 = vmatprep.subr.mxu0 0.0
        %1620 = vmatpush1.msra.mxu0 0.0
        %1621 = vmatprep.subr.mxu0 0.0
        %1622 = vmatpush1.msra.mxu0 0.0
        %1623 = vmatprep.subr.mxu0 0.0
        %1624 = vmatpush1.msra.mxu0 0.0
        %1625 = vmatprep.subr.mxu0 0.0
        %1626 = vmatpush1.msra.mxu0 0.0
        %1627 = vmatprep.subr.mxu0 0.0
        %1628 = vmatpush1.msra.mxu0 0.0
        %1629 = vmatprep.subr.mxu0 0.0
        %1630 = vmatpush1.msra.mxu0 0.0
        %1631 = vmatprep.subr.mxu0 0.0
        %1632 = vmatpush1.msra.mxu0 0.0
        %1633 = vmatprep.subr.mxu0 0.0
        %1634 = vmatpush1.msra.mxu0 0.0
        %1635 = vmatprep.subr.mxu0 0.0
        %1636 = vmatpush1.msra.mxu0 0.0
        %1637 = vmatprep.subr.mxu0 0.0
        %1638 = vmatpush1.msra.mxu0 0.0
        %1639 = vmatprep.mubr.f32.mxu0 0.0
        %1640 = vmatmul.mubr.f32.gmra.mrb[0].mxu0 %v1476
        %v1641 = vpop.f32.mrb[0].mxu0
        %v1642 = vadd.f32 0.0, %v1641
        %v1643 = vpop.f32.mrb[0].mxu0
        %v1644 = vadd.f32 0.0, %v1643
        %1645 = vmatprep.mubr.f32.mxu0 0.0
        %1646 = vmatmul.mubr.f32.gmra.mrb[0].mxu0 %v1479
        %v1647 = vpop.f32.mrb[0].mxu0
        %v1648 = vadd.f32 0.0, %v1647
        %v1649 = vpop.f32.mrb[0].mxu0
        %v1650 = vadd.f32 0.0, %v1649
        %1651 = vmatprep.mubr.f32.mxu0 0.0
        %1652 = vmatmul.mubr.f32.gmra.mrb[0].mxu0 %v1482
        %v1653 = vpop.f32.mrb[0].mxu0
        %v1654 = vadd.f32 0.0, %v1653
        %v1655 = vpop.f32.mrb[0].mxu0
        %v1656 = vadd.f32 0.0, %v1655
        %1657 = vmatprep.mubr.f32.mxu0 0.0
        %1658 = vmatmul.mubr.f32.gmra.mrb[0].mxu0 %v1485
        %v1659 = vpop.f32.mrb[0].mxu0
        %v1660 = vadd.f32 0.0, %v1659
        %v1661 = vpop.f32.mrb[0].mxu0
        %v1662 = vadd.f32 0.0, %v1661
        %1663 = vmatprep.mubr.f32.mxu0 0.0
        %1664 = vmatmul.mubr.f32.gmra.mrb[0].mxu0 %v1488
        %v1665 = vpop.f32.mrb[0].mxu0
        %v1666 = vadd.f32 0.0, %v1665
        %v1667 = vpop.f32.mrb[0].mxu0
        %v1668 = vadd.f32 0.0, %v1667
        %1669 = vmatprep.mubr.f32.mxu0 0.0
        %1670 = vmatmul.mubr.f32.gmra.mrb[0].mxu0 %v1491
        %v1671 = vpop.f32.mrb[0].mxu0
        %v1672 = vadd.f32 0.0, %v1671
        %v1673 = vpop.f32.mrb[0].mxu0
        %v1674 = vadd.f32 0.0, %v1673
        %1675 = vmatprep.mubr.f32.mxu0 0.0
        %1676 = vmatmul.mubr.f32.gmra.mrb[0].mxu0 %v1494
        %v1677 = vpop.f32.mrb[0].mxu0
        %v1678 = vadd.f32 0.0, %v1677
        %v1679 = vpop.f32.mrb[0].mxu0
        %v1680 = vadd.f32 0.0, %v1679
        %1681 = vmatprep.mubr.f32.mxu0 0.0
        %1682 = vmatmul.mubr.f32.gmra.mrb[0].mxu0 %v1497
        %v1683 = vpop.f32.mrb[0].mxu0
        %v1684 = vadd.f32 0.0, %v1683
        %v1685 = vpop.f32.mrb[0].mxu0
        %v1686 = vadd.f32 0.0, %v1685
        %1687 = vmatprep.mubr.f32.mxu0 0.0
        %1688 = vmatmul.mubr.f32.gmra.mrb[0].mxu0 %v1500
        %v1689 = vpop.f32.mrb[0].mxu0
        %v1690 = vadd.f32 0.0, %v1689
        %v1691 = vpop.f32.mrb[0].mxu0
        %v1692 = vadd.f32 0.0, %v1691
        %1693 = vmatprep.mubr.f32.mxu0 0.0
        %1694 = vmatmul.mubr.f32.gmra.mrb[0].mxu0 %v1503
        %v1695 = vpop.f32.mrb[0].mxu0
        %v1696 = vadd.f32 0.0, %v1695
        %v1697 = vpop.f32.mrb[0].mxu0
        %v1698 = vadd.f32 0.0, %v1697
        %1699 = vmatprep.mubr.f32.mxu0 0.0
        %1700 = vmatmul.mubr.f32.gmra.mrb[0].mxu0 %v1506
        %v1701 = vpop.f32.mrb[0].mxu0
        %v1702 = vadd.f32 0.0, %v1701
        %v1703 = vpop.f32.mrb[0].mxu0
        %v1704 = vadd.f32 0.0, %v1703
        %1705 = vmatprep.mubr.f32.mxu0 0.0
        %1706 = vmatmul.mubr.f32.gmra.mrb[0].mxu0 %v1509
        %v1707 = vpop.f32.mrb[0].mxu0
        %v1708 = vadd.f32 0.0, %v1707
        %v1709 = vpop.f32.mrb[0].mxu0
        %v1710 = vadd.f32 0.0, %v1709
        %1711 = vmatprep.mubr.f32.mxu0 0.0
        %1712 = vmatmul.mubr.f32.gmra.mrb[0].mxu0 %v1512
        %v1713 = vpop.f32.mrb[0].mxu0
        %v1714 = vadd.f32 0.0, %v1713
        %v1715 = vpop.f32.mrb[0].mxu0
        %v1716 = vadd.f32 0.0, %v1715
        %1717 = vmatprep.mubr.f32.mxu0 0.0
        %1718 = vmatmul.mubr.f32.gmra.mrb[0].mxu0 %v1515
        %v1719 = vpop.f32.mrb[0].mxu0
        %v1720 = vadd.f32 0.0, %v1719
        %v1721 = vpop.f32.mrb[0].mxu0
        %v1722 = vadd.f32 0.0, %v1721
        %1723 = vmatprep.mubr.f32.mxu0 0.0
        %1724 = vmatmul.mubr.f32.gmra.mrb[0].mxu0 %v1518
        %v1725 = vpop.f32.mrb[0].mxu0
        %v1726 = vadd.f32 0.0, %v1725
        %v1727 = vpop.f32.mrb[0].mxu0
        %v1728 = vadd.f32 0.0, %v1727
        %1729 = vmatprep.mubr.f32.mxu0 0.0
        %1730 = vmatmul.mubr.f32.gmra.mrb[0].mxu0 %v1521
        %v1731 = vpop.f32.mrb[0].mxu0
        %v1732 = vadd.f32 0.0, %v1731
        %v1733 = vpop.f32.mrb[0].mxu0
        %v1734 = vadd.f32 0.0, %v1733
        %1735 = vmatprep.mubr.f32.mxu0 0.0
        %1736 = vmatmul.mubr.f32.gmra.mrb[0].mxu0 %v1524
        %v1737 = vpop.f32.mrb[0].mxu0
        %v1738 = vadd.f32 0.0, %v1737
        %v1739 = vpop.f32.mrb[0].mxu0
        %v1740 = vadd.f32 0.0, %v1739
        %1741 = vmatprep.mubr.f32.mxu0 0.0
        %1742 = vmatmul.mubr.f32.gmra.mrb[0].mxu0 %v1527
        %v1743 = vpop.f32.mrb[0].mxu0
        %v1744 = vadd.f32 0.0, %v1743
        %v1745 = vpop.f32.mrb[0].mxu0
        %v1746 = vadd.f32 0.0, %v1745
        %1747 = vmatprep.mubr.f32.mxu0 0.0
        %1748 = vmatmul.mubr.f32.gmra.mrb[0].mxu0 %v1530
        %v1749 = vpop.f32.mrb[0].mxu0
        %v1750 = vadd.f32 0.0, %v1749
        %v1751 = vpop.f32.mrb[0].mxu0
        %v1752 = vadd.f32 0.0, %v1751
        %1753 = vmatprep.mubr.f32.mxu0 0.0
        %1754 = vmatmul.mubr.f32.gmra.mrb[0].mxu0 %v1533
        %v1755 = vpop.f32.mrb[0].mxu0
        %v1756 = vadd.f32 0.0, %v1755
        %v1757 = vpop.f32.mrb[0].mxu0
        %v1758 = vadd.f32 0.0, %v1757
        %1759 = vmatprep.mubr.f32.mxu0 0.0
        %1760 = vmatmul.mubr.f32.gmra.mrb[0].mxu0 %v1536
        %v1761 = vpop.f32.mrb[0].mxu0
        %v1762 = vadd.f32 0.0, %v1761
        %v1763 = vpop.f32.mrb[0].mxu0
        %v1764 = vadd.f32 0.0, %v1763
        %1765 = vmatprep.mubr.f32.mxu0 0.0
        %1766 = vmatmul.mubr.f32.gmra.mrb[0].mxu0 %v1539
        %v1767 = vpop.f32.mrb[0].mxu0
        %v1768 = vadd.f32 0.0, %v1767
        %v1769 = vpop.f32.mrb[0].mxu0
        %v1770 = vadd.f32 0.0, %v1769
        %1771 = vmatprep.mubr.f32.mxu0 0.0
        %1772 = vmatmul.mubr.f32.gmra.mrb[0].mxu0 %v1542
        %v1773 = vpop.f32.mrb[0].mxu0
        %v1774 = vadd.f32 0.0, %v1773
        %v1775 = vpop.f32.mrb[0].mxu0
        %v1776 = vadd.f32 0.0, %v1775
        %1777 = vmatprep.mubr.f32.mxu0 0.0
        %1778 = vmatmul.mubr.f32.gmra.mrb[0].mxu0 %v1545
        %v1779 = vpop.f32.mrb[0].mxu0
        %v1780 = vadd.f32 0.0, %v1779
        %v1781 = vpop.f32.mrb[0].mxu0
        %v1782 = vadd.f32 0.0, %v1781
        %1783 = vmatprep.mubr.f32.mxu0 0.0
        %1784 = vmatmul.mubr.f32.gmra.mrb[0].mxu0 %v1548
        %v1785 = vpop.f32.mrb[0].mxu0
        %v1786 = vadd.f32 0.0, %v1785
        %v1787 = vpop.f32.mrb[0].mxu0
        %v1788 = vadd.f32 0.0, %v1787
        %1789 = vmatprep.mubr.f32.mxu0 0.0
        %1790 = vmatmul.mubr.f32.gmra.mrb[0].mxu0 %v1551
        %v1791 = vpop.f32.mrb[0].mxu0
        %v1792 = vadd.f32 0.0, %v1791
        %v1793 = vpop.f32.mrb[0].mxu0
        %v1794 = vadd.f32 0.0, %v1793
        %1795 = vmatprep.mubr.f32.mxu0 0.0
        %1796 = vmatmul.mubr.f32.gmra.mrb[0].mxu0 %v1554
        %v1797 = vpop.f32.mrb[0].mxu0
        %v1798 = vadd.f32 0.0, %v1797
        %v1799 = vpop.f32.mrb[0].mxu0
        %v1800 = vadd.f32 0.0, %v1799
        %1801 = vmatprep.mubr.f32.mxu0 0.0
        %1802 = vmatmul.mubr.f32.gmra.mrb[0].mxu0 %v1557
        %v1803 = vpop.f32.mrb[0].mxu0
        %v1804 = vadd.f32 0.0, %v1803
        %v1805 = vpop.f32.mrb[0].mxu0
        %v1806 = vadd.f32 0.0, %v1805
        %1807 = vmatprep.mubr.f32.mxu0 0.0
        %1808 = vmatmul.mubr.f32.gmra.mrb[0].mxu0 %v1560
        %v1809 = vpop.f32.mrb[0].mxu0
        %v1810 = vadd.f32 0.0, %v1809
        %v1811 = vpop.f32.mrb[0].mxu0
        %v1812 = vadd.f32 0.0, %v1811
        %1813 = vmatprep.mubr.f32.mxu0 0.0
        %1814 = vmatmul.mubr.f32.gmra.mrb[0].mxu0 %v1563
        %v1815 = vpop.f32.mrb[0].mxu0
        %v1816 = vadd.f32 0.0, %v1815
        %v1817 = vpop.f32.mrb[0].mxu0
        %v1818 = vadd.f32 0.0, %v1817
        %1819 = vmatprep.mubr.f32.mxu0 0.0
        %1820 = vmatmul.mubr.f32.gmra.mrb[0].mxu0 %v1566
        %v1821 = vpop.f32.mrb[0].mxu0
        %v1822 = vadd.f32 0.0, %v1821
        %v1823 = vpop.f32.mrb[0].mxu0
        %v1824 = vadd.f32 0.0, %v1823
        %1825 = vmatprep.mubr.f32.mxu0 0.0
        %1826 = vmatmul.mubr.f32.gmra.mrb[0].mxu0 %v1569
        %v1827 = vpop.f32.mrb[0].mxu0
        %v1828 = vadd.f32 0.0, %v1827
        %v1829 = vpop.f32.mrb[0].mxu0
        %v1830 = vadd.f32 0.0, %v1829
        %1831 = vdwg.mxu0
        %v1832 = vmax.f32 %v1642, %v1654
        %v1833 = vmax.f32 %v1648, %v1660
        %v1834 = vmax.f32 %v1832, %v1666
        %v1835 = vmax.f32 %v1833, %v1672
        %v1836 = vmax.f32 %v1834, %v1678
        %v1837 = vmax.f32 %v1835, %v1684
        %v1838 = vmax.f32 %v1836, %v1690
        %v1839 = vmax.f32 %v1837, %v1696
        %v1840 = vmax.f32 %v1838, %v1702
        %v1841 = vmax.f32 %v1839, %v1708
        %v1842 = vmax.f32 %v1840, %v1714
        %v1843 = vmax.f32 %v1841, %v1720
        %v1844 = vmax.f32 %v1842, %v1726
        %v1845 = vmax.f32 %v1843, %v1732
        %v1846 = vmax.f32 %v1844, %v1738
        %v1847 = vmax.f32 %v1845, %v1744
        %v1848 = vmax.f32 %v1846, %v1750
        %v1849 = vmax.f32 %v1847, %v1756
        %v1850 = vmax.f32 %v1848, %v1762
        %v1851 = vmax.f32 %v1849, %v1768
        %v1852 = vmax.f32 %v1850, %v1774
        %v1853 = vmax.f32 %v1851, %v1780
        %v1854 = vmax.f32 %v1852, %v1786
        %v1855 = vmax.f32 %v1853, %v1792
        %v1856 = vmax.f32 %v1854, %v1798
        %v1857 = vmax.f32 %v1855, %v1804
        %v1858 = vmax.f32 %v1856, %v1810
        %v1859 = vmax.f32 %v1857, %v1816
        %v1860 = vmax.f32 %v1858, %v1822
        %v1861 = vmax.f32 %v1859, %v1828
        %v1862 = vmax.f32 %v1860, %v1861
        %v1863 = vrot.slane %v1862, 4
        %v1864 = vmax.f32 %v1862, %v1863
        %v1865 = vrot.slane %v1864, 2
        %v1866 = vmax.f32 %v1864, %v1865
        %v1867 = vrot.slane %v1866, 1
        %v1868 = vmax.f32 %v1866, %v1867
        %v1869 = vmax.f32 %v1644, %v1656
        %v1870 = vmax.f32 %v1650, %v1662
        %v1871 = vmax.f32 %v1869, %v1668
        %v1872 = vmax.f32 %v1870, %v1674
        %v1873 = vmax.f32 %v1871, %v1680
        %v1874 = vmax.f32 %v1872, %v1686
        %v1875 = vmax.f32 %v1873, %v1692
        %v1876 = vmax.f32 %v1874, %v1698
        %v1877 = vmax.f32 %v1875, %v1704
        %v1878 = vmax.f32 %v1876, %v1710
        %v1879 = vmax.f32 %v1877, %v1716
        %v1880 = vmax.f32 %v1878, %v1722
        %v1881 = vmax.f32 %v1879, %v1728
        %v1882 = vmax.f32 %v1880, %v1734
        %v1883 = vmax.f32 %v1881, %v1740
        %v1884 = vmax.f32 %v1882, %v1746
        %v1885 = vmax.f32 %v1883, %v1752
        %v1886 = vmax.f32 %v1884, %v1758
        %v1887 = vmax.f32 %v1885, %v1764
        %v1888 = vmax.f32 %v1886, %v1770
        %v1889 = vmax.f32 %v1887, %v1776
        %v1890 = vmax.f32 %v1888, %v1782
        %v1891 = vmax.f32 %v1889, %v1788
        %v1892 = vmax.f32 %v1890, %v1794
        %v1893 = vmax.f32 %v1891, %v1800
        %v1894 = vmax.f32 %v1892, %v1806
        %v1895 = vmax.f32 %v1893, %v1812
        %v1896 = vmax.f32 %v1894, %v1818
        %v1897 = vmax.f32 %v1895, %v1824
        %v1898 = vmax.f32 %v1896, %v1830
        %v1899 = vmax.f32 %v1897, %v1898
        %v1900 = vrot.slane %v1899, 4
        %v1901 = vmax.f32 %v1899, %v1900
        %v1902 = vrot.slane %v1901, 2
        %v1903 = vmax.f32 %v1901, %v1902
        %v1904 = vrot.slane %v1903, 1
        %v1905 = vmax.f32 %v1903, %v1904
        %v1906 = vsub.f32 %v1642, %v1868
        %v1907 = vsub.f32 %v1644, %v1905
        %v1908 = vsub.f32 %v1648, %v1868
        %v1909 = vsub.f32 %v1650, %v1905
        %v1910 = vsub.f32 %v1654, %v1868
        %v1911 = vsub.f32 %v1656, %v1905
        %v1912 = vsub.f32 %v1660, %v1868
        %v1913 = vsub.f32 %v1662, %v1905
        %v1914 = vsub.f32 %v1666, %v1868
        %v1915 = vsub.f32 %v1668, %v1905
        %v1916 = vsub.f32 %v1672, %v1868
        %v1917 = vsub.f32 %v1674, %v1905
        %v1918 = vsub.f32 %v1678, %v1868
        %v1919 = vsub.f32 %v1680, %v1905
        %v1920 = vsub.f32 %v1684, %v1868
        %v1921 = vsub.f32 %v1686, %v1905
        %v1922 = vsub.f32 %v1690, %v1868
        %v1923 = vsub.f32 %v1692, %v1905
        %v1924 = vsub.f32 %v1696, %v1868
        %v1925 = vsub.f32 %v1698, %v1905
        %v1926 = vsub.f32 %v1702, %v1868
        %v1927 = vsub.f32 %v1704, %v1905
        %v1928 = vsub.f32 %v1708, %v1868
        %v1929 = vsub.f32 %v1710, %v1905
        %v1930 = vsub.f32 %v1714, %v1868
        %v1931 = vsub.f32 %v1716, %v1905
        %v1932 = vsub.f32 %v1720, %v1868
        %v1933 = vsub.f32 %v1722, %v1905
        %v1934 = vsub.f32 %v1726, %v1868
        %v1935 = vsub.f32 %v1728, %v1905
        %v1936 = vsub.f32 %v1732, %v1868
        %v1937 = vsub.f32 %v1734, %v1905
        %v1938 = vsub.f32 %v1738, %v1868
        %v1939 = vsub.f32 %v1740, %v1905
        %v1940 = vsub.f32 %v1744, %v1868
        %v1941 = vsub.f32 %v1746, %v1905
        %v1942 = vsub.f32 %v1750, %v1868
        %v1943 = vsub.f32 %v1752, %v1905
        %v1944 = vsub.f32 %v1756, %v1868
        %v1945 = vsub.f32 %v1758, %v1905
        %v1946 = vsub.f32 %v1762, %v1868
        %v1947 = vsub.f32 %v1764, %v1905
        %v1948 = vsub.f32 %v1768, %v1868
        %v1949 = vsub.f32 %v1770, %v1905
        %v1950 = vsub.f32 %v1774, %v1868
        %v1951 = vsub.f32 %v1776, %v1905
        %v1952 = vsub.f32 %v1780, %v1868
        %v1953 = vsub.f32 %v1782, %v1905
        %v1954 = vsub.f32 %v1786, %v1868
        %v1955 = vsub.f32 %v1788, %v1905
        %v1956 = vsub.f32 %v1792, %v1868
        %v1957 = vsub.f32 %v1794, %v1905
        %v1958 = vsub.f32 %v1798, %v1868
        %v1959 = vsub.f32 %v1800, %v1905
        %v1960 = vsub.f32 %v1804, %v1868
        %v1961 = vsub.f32 %v1806, %v1905
        %v1962 = vsub.f32 %v1810, %v1868
        %v1963 = vsub.f32 %v1812, %v1905
        %v1964 = vsub.f32 %v1816, %v1868
        %v1965 = vsub.f32 %v1818, %v1905
        %v1966 = vsub.f32 %v1822, %v1868
        %v1967 = vsub.f32 %v1824, %v1905
        %v1968 = vsub.f32 %v1828, %v1868
        %v1969 = vsub.f32 %v1830, %v1905
        %v1970 = vmul.f32 %v1906, 1.442695
        %v1971 = vpow.pop %v1970
        %v1972 = vmul.f32 %v1907, 1.442695
        %v1973 = vpow.pop %v1972
        %v1974 = vmul.f32 %v1908, 1.442695
        %v1975 = vpow.pop %v1974
        %v1976 = vmul.f32 %v1909, 1.442695
        %v1977 = vpow.pop %v1976
        %v1978 = vmul.f32 %v1910, 1.442695
        %v1979 = vpow.pop %v1978
        %v1980 = vmul.f32 %v1911, 1.442695
        %v1981 = vpow.pop %v1980
        %v1982 = vmul.f32 %v1912, 1.442695
        %v1983 = vpow.pop %v1982
        %v1984 = vmul.f32 %v1913, 1.442695
        %v1985 = vpow.pop %v1984
        %v1986 = vmul.f32 %v1914, 1.442695
        %v1987 = vpow.pop %v1986
        %v1988 = vmul.f32 %v1915, 1.442695
        %v1989 = vpow.pop %v1988
        %v1990 = vmul.f32 %v1916, 1.442695
        %v1991 = vpow.pop %v1990
        %v1992 = vmul.f32 %v1917, 1.442695
        %v1993 = vpow.pop %v1992
        %v1994 = vmul.f32 %v1918, 1.442695
        %v1995 = vpow.pop %v1994
        %v1996 = vmul.f32 %v1919, 1.442695
        %v1997 = vpow.pop %v1996
        %v1998 = vmul.f32 %v1920, 1.442695
        %v1999 = vpow.pop %v1998
        %v2000 = vmul.f32 %v1921, 1.442695
        %v2001 = vpow.pop %v2000
        %v2002 = vmul.f32 %v1922, 1.442695
        %v2003 = vpow.pop %v2002
        %v2004 = vmul.f32 %v1923, 1.442695
        %v2005 = vpow.pop %v2004
        %v2006 = vmul.f32 %v1924, 1.442695
        %v2007 = vpow.pop %v2006
        %v2008 = vmul.f32 %v1925, 1.442695
        %v2009 = vpow.pop %v2008
        %v2010 = vmul.f32 %v1926, 1.442695
        %v2011 = vpow.pop %v2010
        %v2012 = vmul.f32 %v1927, 1.442695
        %v2013 = vpow.pop %v2012
        %v2014 = vmul.f32 %v1928, 1.442695
        %v2015 = vpow.pop %v2014
        %v2016 = vmul.f32 %v1929, 1.442695
        %v2017 = vpow.pop %v2016
        %v2018 = vmul.f32 %v1930, 1.442695
        %v2019 = vpow.pop %v2018
        %v2020 = vmul.f32 %v1931, 1.442695
        %v2021 = vpow.pop %v2020
        %v2022 = vmul.f32 %v1932, 1.442695
        %v2023 = vpow.pop %v2022
        %v2024 = vmul.f32 %v1933, 1.442695
        %v2025 = vpow.pop %v2024
        %v2026 = vmul.f32 %v1934, 1.442695
        %v2027 = vpow.pop %v2026
        %v2028 = vmul.f32 %v1935, 1.442695
        %v2029 = vpow.pop %v2028
        %v2030 = vmul.f32 %v1936, 1.442695
        %v2031 = vpow.pop %v2030
        %v2032 = vmul.f32 %v1937, 1.442695
        %v2033 = vpow.pop %v2032
        %v2034 = vmul.f32 %v1938, 1.442695
        %v2035 = vpow.pop %v2034
        %v2036 = vmul.f32 %v1939, 1.442695
        %v2037 = vpow.pop %v2036
        %v2038 = vmul.f32 %v1940, 1.442695
        %v2039 = vpow.pop %v2038
        %v2040 = vmul.f32 %v1941, 1.442695
        %v2041 = vpow.pop %v2040
        %v2042 = vmul.f32 %v1942, 1.442695
        %v2043 = vpow.pop %v2042
        %v2044 = vmul.f32 %v1943, 1.442695
        %v2045 = vpow.pop %v2044
        %v2046 = vmul.f32 %v1944, 1.442695
        %v2047 = vpow.pop %v2046
        %v2048 = vmul.f32 %v1945, 1.442695
        %v2049 = vpow.pop %v2048
        %v2050 = vmul.f32 %v1946, 1.442695
        %v2051 = vpow.pop %v2050
        %v2052 = vmul.f32 %v1947, 1.442695
        %v2053 = vpow.pop %v2052
        %v2054 = vmul.f32 %v1948, 1.442695
        %v2055 = vpow.pop %v2054
        %v2056 = vmul.f32 %v1949, 1.442695
        %v2057 = vpow.pop %v2056
        %v2058 = vmul.f32 %v1950, 1.442695
        %v2059 = vpow.pop %v2058
        %v2060 = vmul.f32 %v1951, 1.442695
        %v2061 = vpow.pop %v2060
        %v2062 = vmul.f32 %v1952, 1.442695
        %v2063 = vpow.pop %v2062
        %v2064 = vmul.f32 %v1953, 1.442695
        %v2065 = vpow.pop %v2064
        %v2066 = vmul.f32 %v1954, 1.442695
        %v2067 = vpow.pop %v2066
        %v2068 = vmul.f32 %v1955, 1.442695
        %v2069 = vpow.pop %v2068
        %v2070 = vmul.f32 %v1956, 1.442695
        %v2071 = vpow.pop %v2070
        %v2072 = vmul.f32 %v1957, 1.442695
        %v2073 = vpow.pop %v2072
        %v2074 = vmul.f32 %v1958, 1.442695
        %v2075 = vpow.pop %v2074
        %v2076 = vmul.f32 %v1959, 1.442695
        %v2077 = vpow.pop %v2076
        %v2078 = vmul.f32 %v1960, 1.442695
        %v2079 = vpow.pop %v2078
        %v2080 = vmul.f32 %v1961, 1.442695
        %v2081 = vpow.pop %v2080
        %v2082 = vmul.f32 %v1962, 1.442695
        %v2083 = vpow.pop %v2082
        %v2084 = vmul.f32 %v1963, 1.442695
        %v2085 = vpow.pop %v2084
        %v2086 = vmul.f32 %v1964, 1.442695
        %v2087 = vpow.pop %v2086
        %v2088 = vmul.f32 %v1965, 1.442695
        %v2089 = vpow.pop %v2088
        %v2090 = vmul.f32 %v1966, 1.442695
        %v2091 = vpow.pop %v2090
        %v2092 = vmul.f32 %v1967, 1.442695
        %v2093 = vpow.pop %v2092
        %v2094 = vmul.f32 %v1968, 1.442695
        %v2095 = vpow.pop %v2094
        %v2096 = vmul.f32 %v1969, 1.442695
        %v2097 = vpow.pop %v2096
        %v2098 = vadd.f32 %v1971, %v1975
        %v2099 = vadd.f32 %v2098, %v1979
        %v2100 = vadd.f32 %v2099, %v1983
        %v2101 = vadd.f32 %v2100, %v1987
        %v2102 = vadd.f32 %v2101, %v1991
        %v2103 = vadd.f32 %v2102, %v1995
        %v2104 = vadd.f32 %v2103, %v1999
        %v2105 = vadd.f32 %v2104, %v2003
        %v2106 = vadd.f32 %v2105, %v2007
        %v2107 = vadd.f32 %v2106, %v2011
        %v2108 = vadd.f32 %v2107, %v2015
        %v2109 = vadd.f32 %v2108, %v2019
        %v2110 = vadd.f32 %v2109, %v2023
        %v2111 = vadd.f32 %v2110, %v2027
        %v2112 = vadd.f32 %v2111, %v2031
        %v2113 = vadd.f32 %v2112, %v2035
        %v2114 = vadd.f32 %v2113, %v2039
        %v2115 = vadd.f32 %v2114, %v2043
        %v2116 = vadd.f32 %v2115, %v2047
        %v2117 = vadd.f32 %v2116, %v2051
        %v2118 = vadd.f32 %v2117, %v2055
        %v2119 = vadd.f32 %v2118, %v2059
        %v2120 = vadd.f32 %v2119, %v2063
        %v2121 = vadd.f32 %v2120, %v2067
        %v2122 = vadd.f32 %v2121, %v2071
        %v2123 = vadd.f32 %v2122, %v2075
        %v2124 = vadd.f32 %v2123, %v2079
        %v2125 = vadd.f32 %v2124, %v2083
        %v2126 = vadd.f32 %v2125, %v2087
        %v2127 = vadd.f32 %v2126, %v2091
        %v2128 = vadd.f32 %v2127, %v2095
        %v2129 = vrot.slane %v2128, 4
        %v2130 = vadd.f32 %v2128, %v2129
        %v2131 = vrot.slane %v2130, 2
        %v2132 = vadd.f32 %v2130, %v2131
        %v2133 = vrot.slane %v2132, 1
        %v2134 = vadd.f32 %v2132, %v2133
        %v2135 = vadd.f32 %v1973, %v1977
        %v2136 = vadd.f32 %v2135, %v1981
        %v2137 = vadd.f32 %v2136, %v1985
        %v2138 = vadd.f32 %v2137, %v1989
        %v2139 = vadd.f32 %v2138, %v1993
        %v2140 = vadd.f32 %v2139, %v1997
        %v2141 = vadd.f32 %v2140, %v2001
        %v2142 = vadd.f32 %v2141, %v2005
        %v2143 = vadd.f32 %v2142, %v2009
        %v2144 = vadd.f32 %v2143, %v2013
        %v2145 = vadd.f32 %v2144, %v2017
        %v2146 = vadd.f32 %v2145, %v2021
        %v2147 = vadd.f32 %v2146, %v2025
        %v2148 = vadd.f32 %v2147, %v2029
        %v2149 = vadd.f32 %v2148, %v2033
        %v2150 = vadd.f32 %v2149, %v2037
        %v2151 = vadd.f32 %v2150, %v2041
        %v2152 = vadd.f32 %v2151, %v2045
        %v2153 = vadd.f32 %v2152, %v2049
        %v2154 = vadd.f32 %v2153, %v2053
        %v2155 = vadd.f32 %v2154, %v2057
        %v2156 = vadd.f32 %v2155, %v2061
        %v2157 = vadd.f32 %v2156, %v2065
        %v2158 = vadd.f32 %v2157, %v2069
        %v2159 = vadd.f32 %v2158, %v2073
        %v2160 = vadd.f32 %v2159, %v2077
        %v2161 = vadd.f32 %v2160, %v2081
        %v2162 = vadd.f32 %v2161, %v2085
        %v2163 = vadd.f32 %v2162, %v2089
        %v2164 = vadd.f32 %v2163, %v2093
        %v2165 = vadd.f32 %v2164, %v2097
        %v2166 = vrot.slane %v2165, 4
        %v2167 = vadd.f32 %v2165, %v2166
        %v2168 = vrot.slane %v2167, 2
        %v2169 = vadd.f32 %v2167, %v2168
        %v2170 = vrot.slane %v2169, 1
        %v2171 = vadd.f32 %v2169, %v2170
        %v2172 = vrcp.pop %v2134
        %v2173 = vrcp.pop %v2171
        %v2174 = vmul.f32 %v551, %v2172
        %v2175 = vmul.f32 %v553, %v2173
        %v2178 = vrot.slane %v2174, 4
        %v2179 = vrot.slane %v2175, 4
        %2182 = vmatprep.subr.mxu0 %v1973
        %2183 = vmatpush1.xpose.msra.mxu0 %v1971
        %2184 = vmatprep.subr.mxu0 %v1977
        %2185 = vmatpush1.xpose.msra.mxu0 %v1975
        %2186 = vmatprep.subr.mxu0 %v1981
        %2187 = vmatpush1.xpose.msra.mxu0 %v1979
        %2188 = vmatprep.subr.mxu0 %v1985
        %2189 = vmatpush1.xpose.msra.mxu0 %v1983
        %2190 = vmatprep.subr.mxu0 %v1989
        %2191 = vmatpush1.xpose.msra.mxu0 %v1987
        %2192 = vmatprep.subr.mxu0 %v1993
        %2193 = vmatpush1.xpose.msra.mxu0 %v1991
        %2194 = vmatprep.subr.mxu0 %v1997
        %2195 = vmatpush1.xpose.msra.mxu0 %v1995
        %2196 = vmatprep.subr.mxu0 %v2001
        %2197 = vmatpush1.xpose.msra.mxu0 %v1999
        %2198 = vmatprep.subr.mxu0 %v2005
        %2199 = vmatpush1.xpose.msra.mxu0 %v2003
        %2200 = vmatprep.subr.mxu0 %v2009
        %2201 = vmatpush1.xpose.msra.mxu0 %v2007
        %2202 = vmatprep.subr.mxu0 %v2013
        %2203 = vmatpush1.xpose.msra.mxu0 %v2011
        %2204 = vmatprep.subr.mxu0 %v2017
        %2205 = vmatpush1.xpose.msra.mxu0 %v2015
        %2206 = vmatprep.subr.mxu0 %v2021
        %2207 = vmatpush1.xpose.msra.mxu0 %v2019
        %2208 = vmatprep.subr.mxu0 %v2025
        %2209 = vmatpush1.xpose.msra.mxu0 %v2023
        %2210 = vmatprep.subr.mxu0 %v2029
        %2211 = vmatpush1.xpose.msra.mxu0 %v2027
        %2212 = vmatprep.subr.mxu0 %v2033
        %2213 = vmatpush1.xpose.msra.mxu0 %v2031
        %2214 = vmatprep.subr.mxu0 %v2037
        %2215 = vmatpush1.xpose.msra.mxu0 %v2035
        %2216 = vmatprep.subr.mxu0 %v2041
        %2217 = vmatpush1.xpose.msra.mxu0 %v2039
        %2218 = vmatprep.subr.mxu0 %v2045
        %2219 = vmatpush1.xpose.msra.mxu0 %v2043
        %2220 = vmatprep.subr.mxu0 %v2049
        %2221 = vmatpush1.xpose.msra.mxu0 %v2047
        %2222 = vmatprep.subr.mxu0 %v2053
        %2223 = vmatpush1.xpose.msra.mxu0 %v2051
        %2224 = vmatprep.subr.mxu0 %v2057
        %2225 = vmatpush1.xpose.msra.mxu0 %v2055
        %2226 = vmatprep.subr.mxu0 %v2061
        %2227 = vmatpush1.xpose.msra.mxu0 %v2059
        %2228 = vmatprep.subr.mxu0 %v2065
        %2229 = vmatpush1.xpose.msra.mxu0 %v2063
        %2230 = vmatprep.subr.mxu0 %v2069
        %2231 = vmatpush1.xpose.msra.mxu0 %v2067
        %2232 = vmatprep.subr.mxu0 %v2073
        %2233 = vmatpush1.xpose.msra.mxu0 %v2071
        %2234 = vmatprep.subr.mxu0 %v2077
        %2235 = vmatpush1.xpose.msra.mxu0 %v2075
        %2236 = vmatprep.subr.mxu0 %v2081
        %2237 = vmatpush1.xpose.msra.mxu0 %v2079
        %2238 = vmatprep.subr.mxu0 %v2085
        %2239 = vmatpush1.xpose.msra.mxu0 %v2083
        %2240 = vmatprep.subr.mxu0 %v2089
        %2241 = vmatpush1.xpose.msra.mxu0 %v2087
        %2242 = vmatprep.subr.mxu0 %v2093
        %2243 = vmatpush1.xpose.msra.mxu0 %v2091
        %2244 = vmatprep.subr.mxu0 %v2097
        %2245 = vmatpush1.xpose.msra.mxu0 %v2095
        %2246 = vmatprep.mubr.f32.mxu0 %v2179
        %2247 = vmatmul.mubr.f32.gmra.mrb[0].mxu0 %v2178
        %v2248 = vpop.f32.mrb[0].mxu0
        %v2249 = vadd.f32 0.0, %v2248
        %v2250 = vpop.f32.mrb[0].mxu0
        %v2251 = vadd.f32 0.0, %v2250
        %2252 = vdwg.mxu0
        %s2253 = scalar_lea.vmem [#allocation4], 8
        %v2254 = vld [vmem:[%s2253] sm:$0xff]
        %v2257 = vcombine.low %v2249, %v2251
        %v2259 = vadd.f32 %v2254, %v2257
        %2260 = vst [vmem:[%s2253] sm:$0xff] %v2259
        // Predicated region
        $region53: #{tpu_custom_call.1} parent=47 // pred_check
          %p2261 = pneg %p330
        $region54: #{tpu_custom_call.1} parent=47 // pred_check_branch
          %2263 = sbr.rel (%p2261) target = $region56
        $region55: #{tpu_custom_call.1} parent=47 // pred_region
          %v2264 = vld [vmem:[#allocation4] sm:$0xff]
          %v2265 = vld [vmem:[#allocation4 + $0x8] sm:$0xff]
          %v2266 = vld [vmem:[%s5] sm:$0xff]
          %v2267 = vld [vmem:[%s6] sm:$0xff]
          %2269 = vset.pattern.permute.xlu0 0
          %2270 = vperm.xlu0 %2269, %v2267
          %v2271 = vpop.permute.xlu0 %2270
          %v2275 = vcombine.low %v2264, %v2265
          %v2276 = vcombine.high %v2264, %v2265
          %vm2279 = vcmask 64512
          %v2281 = vsel %vm2279, %v2266, 0
          %2283 = vmatprep.subr.mxu0 %v2276
          %2284 = vmatpush1.msra.mxu0 %v2275
          %2285 = vmatprep.subr.mxu0 0.0
          %2286 = vmatpush1.msra.mxu0 0.0
          %2287 = vmatprep.subr.mxu0 0.0
          %2288 = vmatpush1.msra.mxu0 0.0
          %2289 = vmatprep.subr.mxu0 0.0
          %2290 = vmatpush1.msra.mxu0 0.0
          %2291 = vmatprep.subr.mxu0 0.0
          %2292 = vmatpush1.msra.mxu0 0.0
          %2293 = vmatprep.subr.mxu0 0.0
          %2294 = vmatpush1.msra.mxu0 0.0
          %2295 = vmatprep.subr.mxu0 0.0
          %2296 = vmatpush1.msra.mxu0 0.0
          %2297 = vmatprep.subr.mxu0 0.0
          %2298 = vmatpush1.msra.mxu0 0.0
          %2299 = vmatprep.subr.mxu0 0.0
          %2300 = vmatpush1.msra.mxu0 0.0
          %2301 = vmatprep.subr.mxu0 0.0
          %2302 = vmatpush1.msra.mxu0 0.0
          %2303 = vmatprep.subr.mxu0 0.0
          %2304 = vmatpush1.msra.mxu0 0.0
          %2305 = vmatprep.subr.mxu0 0.0
          %2306 = vmatpush1.msra.mxu0 0.0
          %2307 = vmatprep.subr.mxu0 0.0
          %2308 = vmatpush1.msra.mxu0 0.0
          %2309 = vmatprep.subr.mxu0 0.0
          %2310 = vmatpush1.msra.mxu0 0.0
          %2311 = vmatprep.subr.mxu0 0.0
          %2312 = vmatpush1.msra.mxu0 0.0
          %2313 = vmatprep.subr.mxu0 0.0
          %2314 = vmatpush1.msra.mxu0 0.0
          %2315 = vmatprep.subr.mxu0 0.0
          %2316 = vmatpush1.msra.mxu0 0.0
          %2317 = vmatprep.subr.mxu0 0.0
          %2318 = vmatpush1.msra.mxu0 0.0
          %2319 = vmatprep.subr.mxu0 0.0
          %2320 = vmatpush1.msra.mxu0 0.0
          %2321 = vmatprep.subr.mxu0 0.0
          %2322 = vmatpush1.msra.mxu0 0.0
          %2323 = vmatprep.subr.mxu0 0.0
          %2324 = vmatpush1.msra.mxu0 0.0
          %2325 = vmatprep.subr.mxu0 0.0
          %2326 = vmatpush1.msra.mxu0 0.0
          %2327 = vmatprep.subr.mxu0 0.0
          %2328 = vmatpush1.msra.mxu0 0.0
          %2329 = vmatprep.subr.mxu0 0.0
          %2330 = vmatpush1.msra.mxu0 0.0
          %2331 = vmatprep.subr.mxu0 0.0
          %2332 = vmatpush1.msra.mxu0 0.0
          %2333 = vmatprep.subr.mxu0 0.0
          %2334 = vmatpush1.msra.mxu0 0.0
          %2335 = vmatprep.subr.mxu0 0.0
          %2336 = vmatpush1.msra.mxu0 0.0
          %2337 = vmatprep.subr.mxu0 0.0
          %2338 = vmatpush1.msra.mxu0 0.0
          %2339 = vmatprep.subr.mxu0 0.0
          %2340 = vmatpush1.msra.mxu0 0.0
          %2341 = vmatprep.subr.mxu0 0.0
          %2342 = vmatpush1.msra.mxu0 0.0
          %2343 = vmatprep.subr.mxu0 0.0
          %2344 = vmatpush1.msra.mxu0 0.0
          %2345 = vmatprep.subr.mxu0 0.0
          %2346 = vmatpush1.msra.mxu0 0.0
          %2347 = vmatprep.mubr.f32.mxu0 0.0
          %2348 = vmatmul.mubr.f32.gmra.mrb[0].mxu0 %v2281
          %v2349 = vpop.f32.mrb[0].mxu0
          %v2350 = vadd.f32 %v2271, %v2349
          %v2351 = vpop.f32.mrb[0].mxu0
          %v2352 = vadd.f32 %v2271, %v2351
          %2353 = vdwg.mxu0
          %2354 = vst [vmem:[%s316] sm:$0xff] %v2350
          %2355 = vst [vmem:[%s316 + $0x8] sm:$0xff] %v2352
        $region56: #{tpu_custom_call.1} parent=47 // pred_fallthru
          _
        %s2356 = sand.u32 %s198, 1
        %s2357 = scalar_lea.sflag [#allocation6], %s2356
        %s2358 = sand.u32 %s198, 1
        %s2359 = smul.addr %s2358, 16
        %s2360 = scalar_lea.vmem [#allocation5], %s2359
        %s2361 = sand.u32 %s226, 1
        %s2362 = scalar_lea.sflag [#allocation8], %s2361
        %s2363 = sand.u32 %s226, 1
        %s2364 = smul.addr %s2363, 16
        %s2365 = scalar_lea.vmem [#allocation7], %s2364
        // Predicated region
        $region57: #{tpu_custom_call.1} parent=47 // pred_check
          %p2366 = pneg %p208
        $region58: #{tpu_custom_call.1} parent=47 // pred_check_branch
          %2368 = sbr.rel (%p2366) target = $region60
        $region59: #{tpu_custom_call.1} parent=47 // pred_region
          %s2370 = ssub.s32 256, 256
          %2371 = vsyncadd %s2357, %s2370
          %s2372 = smul.addr %s30, 2
          %s2373 = smul.addr %s2372, 128
          %s2374 = scalar_lea.hbm %s7, %s2373
          %s2376 = sshll.u32 %s2360, 4
          %s2377 = int_to_ptr.vmem [resolvable:$true] %s2376
          %2379 = dma.vmem_to_hbm [thread:$0]  %s2377, 256, %s2374, %s2357
        $region60: #{tpu_custom_call.1} parent=47 // pred_fallthru
          _
        // Predicated region
        $region61: #{tpu_custom_call.1} parent=47 // pred_check
          %p2380 = pneg %p236
        $region62: #{tpu_custom_call.1} parent=47 // pred_check_branch
          %2382 = sbr.rel (%p2380) target = $region64
        $region63: #{tpu_custom_call.1} parent=47 // pred_region
          %s2383 = smul.u32 2, %s31
          %s2385 = ssub.s32 256, 256
          %2386 = vsyncadd %s2362, %s2385
          %s2387 = smul.addr %s30, 2
          %s2388 = sadd.s32 %s2383, %s2387
          %s2389 = smul.addr %s2388, 128
          %s2390 = scalar_lea.hbm %s8, %s2389
          %s2392 = sshll.u32 %s2365, 4
          %s2393 = int_to_ptr.vmem [resolvable:$true] %s2392
          %2395 = dma.vmem_to_hbm [thread:$0]  %s2393, 256, %s2390, %s2362
        $region64: #{tpu_custom_call.1} parent=47 // pred_fallthru
          _
      $region48: #{tpu_custom_call.1} parent=5 // pred_fallthru
        _
      %p2396 = scmp.le.s32.totalorder 2, %s21
      // Predicated region
      $region65: #{tpu_custom_call.1} parent=5 // pred_check
        %p2397 = pneg %p2396
      $region66: #{tpu_custom_call.1} parent=5 // pred_check_branch
        %2399 = sbr.rel (%p2397) target = $region68
      $region67: #{tpu_custom_call.1} parent=5 // pred_region
        %s2400 = ssub.s32 %s21, 2
        // Predicated region
        $region69: #{tpu_custom_call.1} parent=67 // pred_check
          %p2401 = pneg %p214
        $region70: #{tpu_custom_call.1} parent=67 // pred_check_branch
          %2403 = sbr.rel (%p2401) target = $region72
        $region71: #{tpu_custom_call.1} parent=67 // pred_region
          %s2404 = sand.u32 %s199, 1
          %s2405 = scalar_lea.sflag [#allocation6], %s2404
          %s2406 = sand.u32 %s199, 1
          %s2407 = smul.addr %s2406, 16
          %s2408 = scalar_lea.vmem [#allocation5], %s2407
          %2409 = dma.done %s2405, 256
        $region72: #{tpu_custom_call.1} parent=67 // pred_fallthru
          _
        // Predicated region
        $region73: #{tpu_custom_call.1} parent=67 // pred_check
          %p2410 = pneg %p242
        $region74: #{tpu_custom_call.1} parent=67 // pred_check_branch
          %2412 = sbr.rel (%p2410) target = $region76
        $region75: #{tpu_custom_call.1} parent=67 // pred_region
          %s2413 = sand.u32 %s227, 1
          %s2414 = scalar_lea.sflag [#allocation8], %s2413
          %s2415 = sand.u32 %s227, 1
          %s2416 = smul.addr %s2415, 16
          %s2417 = scalar_lea.vmem [#allocation7], %s2416
          %2418 = dma.done %s2414, 256
        $region76: #{tpu_custom_call.1} parent=67 // pred_fallthru
          _
      $region68: #{tpu_custom_call.1} parent=5 // pred_fallthru
        _
    $region6: #{tpu_custom_call.1} parent=1 // loop_footer
      %s25 = sadd.s32 1, %s21
    $region7: #{tpu_custom_call.1} parent=1 // loop_footer_branch
      %20 = sbr.rel target = $region3
    $region8: #{tpu_custom_call.1} parent=1 // loop_exit
      _
    %2419 = vsyncpa [#allocation6], 1
    %s2420 = scalar_lea.sflag [#allocation6], 1
    %2421 = vsyncpa %s2420, 1
    %2422 = vsyncpa [#allocation8], 1
    %s2423 = scalar_lea.sflag [#allocation8], 1
    %2424 = vsyncpa %s2423, 1

</llo_original>
